<compile_context>
chip_gen: v7x
topology: tpu7x:2x2x1
jax: 0.10.0
libtpu: 0.0.40
codegen_flags: <defaults>
</compile_context>

<pallas_src>
import jax
import jax.numpy as jnp
from jax.experimental import pallas as pl
from jax.experimental.pallas import tpu as pltpu


def mlp_kernel(x_ref, w1_ref, b1_ref, w2_ref, b2_ref, o_ref):
    # x_ref: (TB, 784) f32    w1_ref: (784, Hp) bf16   b1_ref: (1, Hp) f32
    # w2_ref: (Hp, Cp) bf16   b2_ref: (1, Cp) f32      o_ref: (TB, Cp) f32
    # Cast x to bf16 in VMEM/vregs (bf16 MXU path, f32 HBM read only).
    x = x_ref[...].astype(jnp.bfloat16)
    h = jnp.dot(x, w1_ref[...], preferred_element_type=jnp.float32)
    h = jnp.maximum(h + b1_ref[...], 0.0)  # bias + ReLU in f32
    # TODO(synk): dropout omitted (eval mode == identity); training-mode dropout
    # would use pltpu.prng_seed + pltpu.stateful_bernoulli scaled by 1/(1-p).
    h = h.astype(jnp.bfloat16)
    out = jnp.dot(h, w2_ref[...], preferred_element_type=jnp.float32) + b2_ref[...]
    o_ref[...] = out.astype(o_ref.dtype)


def _round_up(n, m):
    return pl.cdiv(n, m) * m


def _pick_batch_tile(batch, tb_max):
    """Largest batch tile that (a) divides `batch` exactly (no HBM pad copy of x),
    (b) is a multiple of 8 (sublane) unless it equals the full batch, and
    (c) gives >=2 grid steps when possible (keeps both v7x TensorCores busy).
    Returns 0 if no clean divisor exists (caller falls back to padding)."""
    if batch <= 8:
        return batch  # single full-batch tile
    divs = [d for d in range(8, min(batch, tb_max) + 1, 8) if batch % d == 0]
    multi = [d for d in divs if batch // d >= 2]
    if multi:
        return max(multi)
    if divs:
        return max(divs)
    if batch <= tb_max:
        return batch  # one full-batch tile (block == full dim, no 8-alignment needed)
    return 0


def prepare_params(w1, b1, w2, b2):
    """One-time packing (model-load time): pad hidden/class dims to 128 lanes
    (semantically identity: relu(0)=0 through zero W2 rows) and cast weights to
    bf16. Hoisted out of the per-call path per perf review."""
    in_feat, hidden = w1.shape
    num_classes = w2.shape[1]
    h_pad = _round_up(hidden, 128)
    c_pad = _round_up(num_classes, 128)
    w1_p = jnp.pad(w1, ((0, 0), (0, h_pad - hidden))).astype(jnp.bfloat16)
    b1_p = jnp.pad(b1.reshape(1, hidden), ((0, 0), (0, h_pad - hidden))).astype(jnp.float32)
    w2_p = jnp.pad(w2, ((0, h_pad - hidden), (0, c_pad - num_classes))).astype(jnp.bfloat16)
    b2_p = jnp.pad(b2.reshape(1, num_classes), ((0, 0), (0, c_pad - num_classes))).astype(jnp.float32)
    return {
        "w1": w1_p, "b1": b1_p, "w2": w2_p, "b2": b2_p,
        "in_feat": in_feat, "num_classes": num_classes,
    }


def experiment_model_forward(x_nchw, params, *, tb_max=1024):
    """x_nchw: (B, 1, 28, 28) float32. Returns logits (B, num_classes) float32."""
    B = x_nchw.shape[0]
    in_feat = params["in_feat"]
    num_classes = params["num_classes"]
    w1_p, b1_p, w2_p, b2_p = params["w1"], params["b1"], params["w2"], params["b2"]
    h_pad = w1_p.shape[1]
    c_pad = w2_p.shape[1]

    # nn.Flatten() on NCHW -> (B, 784), row-major identical to PyTorch.
    # Kept f32: the bf16 cast happens inside the kernel (no extra HBM pass).
    x_flat = x_nchw.reshape(B, in_feat)

    tb = _pick_batch_tile(B, tb_max)
    if tb == 0:
        # Rare fallback: no multiple-of-8 divisor of B <= tb_max -> pad once.
        tb = tb_max
        b_pad = _round_up(B, tb)
        x_flat = jnp.pad(x_flat, ((0, b_pad - B), (0, 0)))
    else:
        b_pad = B

    out = pl.pallas_call(
        mlp_kernel,
        out_shape=jax.ShapeDtypeStruct((b_pad, c_pad), jnp.float32),
        grid_spec=pltpu.PrefetchScalarGridSpec(
            num_scalar_prefetch=0,
            grid=(b_pad // tb,),
            in_specs=[
                pl.BlockSpec((tb, in_feat), lambda i: (i, 0)),      # x: tiled over batch
                pl.BlockSpec((in_feat, h_pad), lambda i: (0, 0)),   # W1: VMEM-resident
                pl.BlockSpec((1, h_pad), lambda i: (0, 0)),         # b1: VMEM-resident
                pl.BlockSpec((h_pad, c_pad), lambda i: (0, 0)),     # W2: VMEM-resident
                pl.BlockSpec((1, c_pad), lambda i: (0, 0)),         # b2: VMEM-resident
            ],
            out_specs=pl.BlockSpec((tb, c_pad), lambda i: (i, 0)),  # lane-dense output
        ),
        compiler_params=pltpu.CompilerParams(
            dimension_semantics=("parallel",),  # >=2 tiles -> both v7x TCs active
        ),
    )(x_flat, w1_p, b1_p, w2_p, b2_p)

    return out[:B, :num_classes]


if __name__ == "__main__":
    # Config: hidden_size=32, num_classes=10, dropout=0.1 (identity at inference).
    B = 512            # picker chooses tb=256 -> two grid steps (pipelining + weight reuse)
    IN_FEAT = 28 * 28
    HIDDEN = 32
    NUM_CLASSES = 10

    key = jax.random.PRNGKey(0)
    kx, kw1, kb1, kw2, kb2 = jax.random.split(key, 5)

    # Deterministic parameter init (PyTorch-like uniform fan-in scaling).
    bound1 = 1.0 / (IN_FEAT ** 0.5)
    bound2 = 1.0 / (HIDDEN ** 0.5)
    w1 = jax.random.uniform(kw1, (IN_FEAT, HIDDEN), jnp.float32, -bound1, bound1)
    b1 = jax.random.uniform(kb1, (HIDDEN,), jnp.float32, -bound1, bound1)
    w2 = jax.random.uniform(kw2, (HIDDEN, NUM_CLASSES), jnp.float32, -bound2, bound2)
    b2 = jax.random.uniform(kb2, (NUM_CLASSES,), jnp.float32, -bound2, bound2)

    x = jax.random.normal(kx, (B, 1, 28, 28), jnp.float32)

    params = prepare_params(w1, b1, w2, b2)      # one-time packing (not per call)
    logits = experiment_model_forward(x, params)
    logits = jax.block_until_ready(logits)

    # Reference check in plain f32 JAX (looser tolerance: bf16 matmul operands in kernel).
    x_flat = x.reshape(B, IN_FEAT)
    ref = jnp.maximum(x_flat @ w1 + b1, 0.0) @ w2 + b2
    assert logits.shape == (B, NUM_CLASSES)
    assert jnp.allclose(logits, ref, atol=5e-2, rtol=5e-2), (
        float(jnp.max(jnp.abs(logits - ref))))

    print("KERNEL_OK")
</pallas_src>

<mosaic_0001>
module attributes {stable_mosaic.version = 11 : i64} {
  func.func @mlp_kernel(%arg0: i32, %arg1: memref<256x784xf32, #tpu.memory_space<vmem>>, %arg2: memref<784x128xbf16, #tpu.memory_space<vmem>>, %arg3: memref<1x128xf32, #tpu.memory_space<vmem>>, %arg4: memref<128x128xbf16, #tpu.memory_space<vmem>>, %arg5: memref<1x128xf32, #tpu.memory_space<vmem>>, %arg6: memref<256x128xf32, #tpu.memory_space<vmem>>) attributes {dimension_semantics = [#tpu.dimension_semantics<parallel>], iteration_bounds = array<i64: 2>, scalar_prefetch = 0 : i64, scratch_operands = 0 : i64, tpu.core_type = #tpu.core_type<tc>, window_params = [{transform_indices = @transform_0, window_bounds = array<i64: 256, 784>}, {pipeline_mode = #tpu.pipeline_mode<synchronous>, transform_indices = @transform_1, window_bounds = array<i64: 784, 128>}, {pipeline_mode = #tpu.pipeline_mode<synchronous>, transform_indices = @transform_2, window_bounds = array<i64: 1, 128>}, {pipeline_mode = #tpu.pipeline_mode<synchronous>, transform_indices = @transform_3, window_bounds = array<i64: 128, 128>}, {pipeline_mode = #tpu.pipeline_mode<synchronous>, transform_indices = @transform_4, window_bounds = array<i64: 1, 128>}, {transform_indices = @transform_5, window_bounds = array<i64: 256, 128>}]} {
    %c0 = arith.constant 0 : index
    %c0_0 = arith.constant 0 : index
    %0 = vector.load %arg1[%c0, %c0_0] : memref<256x784xf32, #tpu.memory_space<vmem>>, vector<256x784xf32>
    %1 = arith.truncf %0 : vector<256x784xf32> to vector<256x784xbf16>
    %c0_1 = arith.constant 0 : index
    %c0_2 = arith.constant 0 : index
    %2 = vector.load %arg2[%c0_1, %c0_2] : memref<784x128xbf16, #tpu.memory_space<vmem>>, vector<784x128xbf16>
    %cst = arith.constant dense<0.000000e+00> : vector<256x128xf32>
    %3 = tpu.matmul %1, %2, %cst {dimension_numbers = #tpu.dot_dimension_numbers<[1], [0], [0], [1], [0, 0, 1, 1], [], []>} : vector<256x784xbf16>, vector<784x128xbf16>, vector<256x128xf32> -> vector<256x128xf32>
    %c0_3 = arith.constant 0 : index
    %c0_4 = arith.constant 0 : index
    %4 = vector.load %arg3[%c0_3, %c0_4] : memref<1x128xf32, #tpu.memory_space<vmem>>, vector<1x128xf32>
    %5 = vector.broadcast %4 : vector<1x128xf32> to vector<256x128xf32>
    %6 = arith.addf %3, %5 : vector<256x128xf32>
    %cst_5 = arith.constant 0.000000e+00 : f32
    %7 = vector.broadcast %cst_5 : f32 to vector<256x128xf32>
    %8 = arith.maximumf %6, %7 : vector<256x128xf32>
    %9 = arith.truncf %8 : vector<256x128xf32> to vector<256x128xbf16>
    %c0_6 = arith.constant 0 : index
    %c0_7 = arith.constant 0 : index
    %10 = vector.load %arg4[%c0_6, %c0_7] : memref<128x128xbf16, #tpu.memory_space<vmem>>, vector<128x128xbf16>
    %cst_8 = arith.constant dense<0.000000e+00> : vector<256x128xf32>
    %11 = tpu.matmul %9, %10, %cst_8 {dimension_numbers = #tpu.dot_dimension_numbers<[1], [0], [0], [1], [0, 0, 1, 1], [], []>} : vector<256x128xbf16>, vector<128x128xbf16>, vector<256x128xf32> -> vector<256x128xf32>
    %c0_9 = arith.constant 0 : index
    %c0_10 = arith.constant 0 : index
    %12 = vector.load %arg5[%c0_9, %c0_10] : memref<1x128xf32, #tpu.memory_space<vmem>>, vector<1x128xf32>
    %13 = vector.broadcast %12 : vector<1x128xf32> to vector<256x128xf32>
    %14 = arith.addf %11, %13 : vector<256x128xf32>
    %c0_11 = arith.constant 0 : index
    %c0_12 = arith.constant 0 : index
    %15 = vector.load %arg6[%c0_11, %c0_12] : memref<256x128xf32, #tpu.memory_space<vmem>>, vector<256x128xf32>
    tpu.vector_store %arg6[%c0_11, %c0_12], %14 {strides = array<i32>} : memref<256x128xf32, #tpu.memory_space<vmem>>, vector<256x128xf32>,
    return
  }
  func.func @transform_0(%arg0: i32) -> (i32, i32) {
    %c0_i32 = arith.constant 0 : i32
    %c0_i32_0 = arith.constant 0 : i32
    return %arg0, %c0_i32 : i32, i32
  }
  func.func @transform_1(%arg0: i32) -> (i32, i32) {
    %c0_i32 = arith.constant 0 : i32
    %c0_i32_0 = arith.constant 0 : i32
    %c0_i32_1 = arith.constant 0 : i32
    return %c0_i32, %c0_i32_0 : i32, i32
  }
  func.func @transform_2(%arg0: i32) -> (i32, i32) {
    %c0_i32 = arith.constant 0 : i32
    %c0_i32_0 = arith.constant 0 : i32
    %c0_i32_1 = arith.constant 0 : i32
    return %c0_i32, %c0_i32_0 : i32, i32
  }
  func.func @transform_3(%arg0: i32) -> (i32, i32) {
    %c0_i32 = arith.constant 0 : i32
    %c0_i32_0 = arith.constant 0 : i32
    %c0_i32_1 = arith.constant 0 : i32
    return %c0_i32, %c0_i32_0 : i32, i32
  }
  func.func @transform_4(%arg0: i32) -> (i32, i32) {
    %c0_i32 = arith.constant 0 : i32
    %c0_i32_0 = arith.constant 0 : i32
    %c0_i32_1 = arith.constant 0 : i32
    return %c0_i32, %c0_i32_0 : i32, i32
  }
  func.func @transform_5(%arg0: i32) -> (i32, i32) {
    %c0_i32 = arith.constant 0 : i32
    %c0_i32_0 = arith.constant 0 : i32
    return %arg0, %c0_i32 : i32, i32
  }
}

</mosaic_0001>

<llo_original>
// kernel: tpu_custom_call.1
$region0: #{tpu_custom_call.1}
  #allocation0 [shape = 'u32[]', space=smem, size = 0x4, offset = 0x4, fixed_abs, tag = 'smem constant byte address 0x4 - core index']
  #allocation1 [shape = 'u32[144,128]{1,0:T(1,128)}', space=vmem, size = 0x12000, scoped, tag = 'internal scratch']
  %s0 = inlined_call_operand.vmem [shape: f32[512,784], index: 0, kind: input, shape index: {}]
  %s1 = inlined_call_operand.vmem [shape: bf16[784,128], index: 1, kind: input, shape index: {}]
  %s2 = inlined_call_operand.vmem [shape: f32[1,128], index: 2, kind: input, shape index: {}]
  %s3 = inlined_call_operand.vmem [shape: bf16[128,128], index: 3, kind: input, shape index: {}]
  %s4 = inlined_call_operand.vmem [shape: f32[1,128], index: 4, kind: input, shape index: {}]
  %s5 = inlined_call_operand.hbm [shape: f32[512,128], index: 5, kind: output, shape index: {}]
  %s6 = sld [smem:[#allocation0]]
  $region53: #{tpu_custom_call.1} parent=0
    _
  %s8 = ssub.s32 1, %s6
  %s9 = scalar_select 0, %s8, %s6
  $region1: #{tpu_custom_call.1} parent=0
    #allocation2 [shape = 'u8[262144]{0}', space=vmem, size = 0x40000, scoped, tag = 'output window, operand 0']
    #allocation3 [shape = 's32[2]{0}', space=sflag, size = 0x8, scoped, tag = 'scoped memory for tpu_custom_call.1']
    %10 = vsyncpa [#allocation3], 0
    %s11 = scalar_lea.sflag [#allocation3], 1
    %12 = vsyncpa %s11, 0
    loop: start=0, step=1, limit=4
    $region2: #{tpu_custom_call.1} parent=1 // loop_pre_header
      _
    $region3: #{tpu_custom_call.1} parent=1 // loop_header
      %s14 = sphi 0, %s18
      %p15 = scmp.ge.s32.totalorder %s14, 4
      %s24 = sphi 0, %s26
      %s27 = sphi 0, %s24
      %s28 = sphi 0, %s27
      %s44 = sphi 0, %s28
      %s48 = sphi 0, %s48
      %s50 = sphi 0, %s48
      %s51 = sphi 0, %s50
      %s65 = sphi 0, %s51
      %s69 = sphi 0, %s69
      %s71 = sphi 0, %s69
      %s72 = sphi 0, %s71
      %s86 = sphi 0, %s72
      %s90 = sphi 0, %s90
      %s92 = sphi 0, %s90
      %s93 = sphi 0, %s92
      %s107 = sphi 0, %s93
      %s111 = sphi 0, %s111
      %s113 = sphi 0, %s111
      %s114 = sphi 0, %s113
      %s128 = sphi 0, %s114
      %s134 = sphi 0, %s136
      %s137 = sphi 0, %s134
      %s138 = sphi 0, %s137
      %s154 = sphi 0, %s138
    $region4: #{tpu_custom_call.1} parent=1 // loop_header_branch
      %17 = sbr.rel (%p15) target = $region8
    $region5: #{tpu_custom_call.1} parent=1 // loop_body
      %s19 = ssub.s32 %s14, 1
      %s20 = ssub.s32 %s14, 2
      %s21 = sadd.s32 %s14, 1
      %s22 = ssub.s32 %s14, %s21
      %p23 = scmp.eq.s32.totalorder %s22, 0
      %s25 = sadd.s32 %s24, 1
      %s26 = scalar_select %p23, %s24, %s25
      %p29 = pneg %p23
      %p30 = scmp.eq.s32.totalorder %s14, 1
      %p31 = por %p29, %p30
      %p32 = scmp.ne.s32.totalorder %s24, %s27
      %p33 = scmp.eq.s32.totalorder %s14, 0
      %p34 = por %p32, %p33
      %p35 = scmp.ne.s32.totalorder %s24, %s27
      %p36 = scmp.eq.s32.totalorder %s19, 1
      %p37 = por %p35, %p36
      %p38 = scmp.ne.s32.totalorder %s27, %s28
      %p39 = scmp.eq.s32.totalorder %s19, 0
      %p40 = por %p38, %p39
      %p41 = scmp.ne.s32.totalorder %s27, %s28
      %p42 = scmp.eq.s32.totalorder %s20, 1
      %p43 = por %p41, %p42
      %p45 = scmp.ne.s32.totalorder %s28, %s44
      %p46 = scmp.eq.s32.totalorder %s20, 0
      %p47 = por %p45, %p46
      %s49 = sadd.s32 %s48, 1
      %p52 = scmp.eq.s32.totalorder %s14, 1
      %p53 = scmp.ne.s32.totalorder %s48, %s50
      %p54 = scmp.eq.s32.totalorder %s14, 0
      %p55 = por %p53, %p54
      %p56 = scmp.ne.s32.totalorder %s48, %s50
      %p57 = scmp.eq.s32.totalorder %s19, 1
      %p58 = por %p56, %p57
      %p59 = scmp.ne.s32.totalorder %s50, %s51
      %p60 = scmp.eq.s32.totalorder %s19, 0
      %p61 = por %p59, %p60
      %p62 = scmp.ne.s32.totalorder %s50, %s51
      %p63 = scmp.eq.s32.totalorder %s20, 1
      %p64 = por %p62, %p63
      %p66 = scmp.ne.s32.totalorder %s51, %s65
      %p67 = scmp.eq.s32.totalorder %s20, 0
      %p68 = por %p66, %p67
      %s70 = sadd.s32 %s69, 1
      %p73 = scmp.eq.s32.totalorder %s14, 1
      %p74 = scmp.ne.s32.totalorder %s69, %s71
      %p75 = scmp.eq.s32.totalorder %s14, 0
      %p76 = por %p74, %p75
      %p77 = scmp.ne.s32.totalorder %s69, %s71
      %p78 = scmp.eq.s32.totalorder %s19, 1
      %p79 = por %p77, %p78
      %p80 = scmp.ne.s32.totalorder %s71, %s72
      %p81 = scmp.eq.s32.totalorder %s19, 0
      %p82 = por %p80, %p81
      %p83 = scmp.ne.s32.totalorder %s71, %s72
      %p84 = scmp.eq.s32.totalorder %s20, 1
      %p85 = por %p83, %p84
      %p87 = scmp.ne.s32.totalorder %s72, %s86
      %p88 = scmp.eq.s32.totalorder %s20, 0
      %p89 = por %p87, %p88
      %s91 = sadd.s32 %s90, 1
      %p94 = scmp.eq.s32.totalorder %s14, 1
      %p95 = scmp.ne.s32.totalorder %s90, %s92
      %p96 = scmp.eq.s32.totalorder %s14, 0
      %p97 = por %p95, %p96
      %p98 = scmp.ne.s32.totalorder %s90, %s92
      %p99 = scmp.eq.s32.totalorder %s19, 1
      %p100 = por %p98, %p99
      %p101 = scmp.ne.s32.totalorder %s92, %s93
      %p102 = scmp.eq.s32.totalorder %s19, 0
      %p103 = por %p101, %p102
      %p104 = scmp.ne.s32.totalorder %s92, %s93
      %p105 = scmp.eq.s32.totalorder %s20, 1
      %p106 = por %p104, %p105
      %p108 = scmp.ne.s32.totalorder %s93, %s107
      %p109 = scmp.eq.s32.totalorder %s20, 0
      %p110 = por %p108, %p109
      %s112 = sadd.s32 %s111, 1
      %p115 = scmp.eq.s32.totalorder %s14, 1
      %p116 = scmp.ne.s32.totalorder %s111, %s113
      %p117 = scmp.eq.s32.totalorder %s14, 0
      %p118 = por %p116, %p117
      %p119 = scmp.ne.s32.totalorder %s111, %s113
      %p120 = scmp.eq.s32.totalorder %s19, 1
      %p121 = por %p119, %p120
      %p122 = scmp.ne.s32.totalorder %s113, %s114
      %p123 = scmp.eq.s32.totalorder %s19, 0
      %p124 = por %p122, %p123
      %p125 = scmp.ne.s32.totalorder %s113, %s114
      %p126 = scmp.eq.s32.totalorder %s20, 1
      %p127 = por %p125, %p126
      %p129 = scmp.ne.s32.totalorder %s114, %s128
      %p130 = scmp.eq.s32.totalorder %s20, 0
      %p131 = por %p129, %p130
      %s132 = ssub.s32 %s14, %s21
      %p133 = scmp.eq.s32.totalorder %s132, 0
      %s135 = sadd.s32 %s134, 1
      %s136 = scalar_select %p133, %s134, %s135
      %p139 = pneg %p133
      %p140 = scmp.eq.s32.totalorder %s14, 1
      %p141 = por %p139, %p140
      %p142 = scmp.ne.s32.totalorder %s134, %s137
      %p143 = scmp.eq.s32.totalorder %s14, 0
      %p144 = por %p142, %p143
      %p145 = scmp.ne.s32.totalorder %s134, %s137
      %p146 = scmp.eq.s32.totalorder %s19, 1
      %p147 = por %p145, %p146
      %p148 = scmp.ne.s32.totalorder %s137, %s138
      %p149 = scmp.eq.s32.totalorder %s19, 0
      %p150 = por %p148, %p149
      %p151 = scmp.ne.s32.totalorder %s137, %s138
      %p152 = scmp.eq.s32.totalorder %s20, 1
      %p153 = por %p151, %p152
      %p155 = scmp.ne.s32.totalorder %s138, %s154
      %p156 = scmp.eq.s32.totalorder %s20, 0
      %p157 = por %p155, %p156
      %p158 = scmp.le.s32.totalorder 1, %s14
      %p159 = scmp.lt.s32.totalorder %s14, 3
      %p160 = pnand %p158, %p159
      %p161 = pneg %p160
      // Predicated region
      $region9: #{tpu_custom_call.1} parent=5 // pred_check
        _
      $region10: #{tpu_custom_call.1} parent=5 // pred_check_branch
        %163 = sbr.rel (%p160) target = $region12
      $region11: #{tpu_custom_call.1} parent=5 // pred_region
        %s164 = ssub.s32 %s14, 1
        // Predicated region
        $region13: #{tpu_custom_call.1} parent=11 // pred_check
          %p165 = pneg %p61
        $region14: #{tpu_custom_call.1} parent=11 // pred_check_branch
          %167 = sbr.rel (%p165) target = $region16
        $region15: #{tpu_custom_call.1} parent=11 // pred_region
          _
        $region16: #{tpu_custom_call.1} parent=11 // pred_fallthru
          _
        // Predicated region
        $region17: #{tpu_custom_call.1} parent=11 // pred_check
          %p168 = pneg %p82
        $region18: #{tpu_custom_call.1} parent=11 // pred_check_branch
          %170 = sbr.rel (%p168) target = $region20
        $region19: #{tpu_custom_call.1} parent=11 // pred_region
          _
        $region20: #{tpu_custom_call.1} parent=11 // pred_fallthru
          _
        // Predicated region
        $region21: #{tpu_custom_call.1} parent=11 // pred_check
          %p171 = pneg %p103
        $region22: #{tpu_custom_call.1} parent=11 // pred_check_branch
          %173 = sbr.rel (%p171) target = $region24
        $region23: #{tpu_custom_call.1} parent=11 // pred_region
          _
        $region24: #{tpu_custom_call.1} parent=11 // pred_fallthru
          _
        // Predicated region
        $region25: #{tpu_custom_call.1} parent=11 // pred_check
          %p174 = pneg %p124
        $region26: #{tpu_custom_call.1} parent=11 // pred_check_branch
          %176 = sbr.rel (%p174) target = $region28
        $region27: #{tpu_custom_call.1} parent=11 // pred_region
          _
        $region28: #{tpu_custom_call.1} parent=11 // pred_fallthru
          _
      $region12: #{tpu_custom_call.1} parent=5 // pred_fallthru
        _
      %p177 = scmp.lt.s32.totalorder %s14, 2
      // Predicated region
      $region29: #{tpu_custom_call.1} parent=5 // pred_check
        %p178 = pneg %p177
      $region30: #{tpu_custom_call.1} parent=5 // pred_check_branch
        %180 = sbr.rel (%p178) target = $region32
      $region31: #{tpu_custom_call.1} parent=5 // pred_region
        // Predicated region
        $region33: #{tpu_custom_call.1} parent=31 // pred_check
          %p181 = pneg %p34
        $region34: #{tpu_custom_call.1} parent=31 // pred_check_branch
          %183 = sbr.rel (%p181) target = $region36
        $region35: #{tpu_custom_call.1} parent=31 // pred_region
          %s184 = smul.u32 32, %s14
          %p185 = scmp.lt.s32.totalorder %s184, 63
          %s186 = scalar_select %p185, %s184, 63
          %s187 = smul.addr %s186, 7
          %s188 = smul.addr %s187, 8
          %s189 = scalar_lea.vmem %s0, %s188
          %s190 = smul.u32 32, %s14
        $region36: #{tpu_custom_call.1} parent=31 // pred_fallthru
          _
      $region32: #{tpu_custom_call.1} parent=5 // pred_fallthru
        _
      %p191 = scmp.le.s32.totalorder 1, %s14
      %p192 = scmp.lt.s32.totalorder %s14, 3
      %p193 = pnand %p191, %p192
      %p194 = pneg %p193
      // Predicated region
      $region37: #{tpu_custom_call.1} parent=5 // pred_check
        _
      $region38: #{tpu_custom_call.1} parent=5 // pred_check_branch
        %196 = sbr.rel (%p193) target = $region40
      $region39: #{tpu_custom_call.1} parent=5 // pred_region
        %s197 = ssub.s32 %s14, 1
        %s198 = smul.u32 32, %s19
        %p199 = scmp.lt.s32.totalorder %s198, 63
        %s200 = scalar_select %p199, %s198, 63
        %s201 = smul.addr %s200, 7
        %s202 = smul.addr %s201, 8
        %s203 = scalar_lea.vmem %s0, %s202
        %p204 = pneg %p40
        %p205 = pneg %p37
        %p206 = pneg %p61
        %p207 = pneg %p58
        %p208 = pneg %p82
        %p209 = pneg %p79
        %p210 = pneg %p103
        %p211 = pneg %p100
        %p212 = pneg %p124
        %p213 = pneg %p121
        %p214 = pneg %p150
        %p215 = pneg %p147
        %s216 = sand.u32 %s137, 1
        %s217 = scalar_lea.sflag [#allocation3], %s216
        %s218 = sand.u32 %s137, 1
        %s219 = smul.addr %s218, 256
        %s220 = scalar_lea.vmem [#allocation2], %s219
        %s221 = smul.u32 32, %s19
        %p222 = scmp.lt.s32.totalorder %s221, 63
        %s223 = scalar_select %p222, %s221, 63
        %s224 = smul.addr %s223, 7
        %s225 = smul.addr %s224, 8
        %s226 = scalar_lea.vmem %s0, %s225
        %s227 = smul.u32 32, %s19
        %s228 = smul.u32 32, %s19
        %v230 = vld [vmem:[%s226] sm:$0xff]
        %v231 = vld [vmem:[%s226 + $0x8] sm:$0xff]
        %v232 = vld [vmem:[%s226 + $0x10] sm:$0xff]
        %v233 = vld [vmem:[%s226 + $0x18] sm:$0xff]
        %v234 = vld [vmem:[%s226 + $0x20] sm:$0xff]
        %v235 = vld [vmem:[%s226 + $0x28] sm:$0xff]
        %v236 = vld [vmem:[%s226 + $0x30] sm:$0xff]
        %v237 = vld [vmem:[%s226 + $0x38] sm:$0xff]
        %v238 = vld [vmem:[%s226 + $0x40] sm:$0xff]
        %v239 = vld [vmem:[%s226 + $0x48] sm:$0xff]
        %v240 = vld [vmem:[%s226 + $0x50] sm:$0xff]
        %v241 = vld [vmem:[%s226 + $0x58] sm:$0xff]
        %v242 = vld [vmem:[%s226 + $0x60] sm:$0xff]
        %v243 = vld [vmem:[%s226 + $0x68] sm:$0xff]
        %v244 = vld [vmem:[%s226 + $0x70] sm:$0xff]
        %v245 = vld [vmem:[%s226 + $0x78] sm:$0xff]
        %v246 = vld [vmem:[%s226 + $0x80] sm:$0xff]
        %v247 = vld [vmem:[%s226 + $0x88] sm:$0xff]
        %v248 = vld [vmem:[%s226 + $0x90] sm:$0xff]
        %v249 = vld [vmem:[%s226 + $0x98] sm:$0xff]
        %v250 = vld [vmem:[%s226 + $0xa0] sm:$0xff]
        %v251 = vld [vmem:[%s226 + $0xa8] sm:$0xff]
        %v252 = vld [vmem:[%s226 + $0xb0] sm:$0xff]
        %v253 = vld [vmem:[%s226 + $0xb8] sm:$0xff]
        %v254 = vld [vmem:[%s226 + $0xc0] sm:$0xff]
        %v255 = vld [vmem:[%s226 + $0xc8] sm:$0xff]
        %v256 = vld [vmem:[%s226 + $0xd0] sm:$0xff]
        %v257 = vld [vmem:[%s226 + $0xd8] sm:$0xff]
        %v258 = vld [vmem:[%s226 + $0xe0] sm:$0xff]
        %v259 = vld [vmem:[%s226 + $0xe8] sm:$0xff]
        %v260 = vld [vmem:[%s226 + $0xf0] sm:$0xff]
        %v261 = vld [vmem:[%s226 + $0xf8] sm:$0xff]
        %v262 = vld [vmem:[%s226 + $0x100] sm:$0xff]
        %v263 = vld [vmem:[%s226 + $0x108] sm:$0xff]
        %v264 = vld [vmem:[%s226 + $0x110] sm:$0xff]
        %v265 = vld [vmem:[%s226 + $0x118] sm:$0xff]
        %v266 = vld [vmem:[%s226 + $0x120] sm:$0xff]
        %v267 = vld [vmem:[%s226 + $0x128] sm:$0xff]
        %v268 = vld [vmem:[%s226 + $0x130] sm:$0xff]
        %v269 = vld [vmem:[%s226 + $0x138] sm:$0xff]
        %v270 = vld [vmem:[%s226 + $0x140] sm:$0xff]
        %v271 = vld [vmem:[%s226 + $0x148] sm:$0xff]
        %v272 = vld [vmem:[%s226 + $0x150] sm:$0xff]
        %v273 = vld [vmem:[%s226 + $0x158] sm:$0xff]
        %v274 = vld [vmem:[%s226 + $0x160] sm:$0xff]
        %v275 = vld [vmem:[%s226 + $0x168] sm:$0xff]
        %v276 = vld [vmem:[%s226 + $0x170] sm:$0xff]
        %v277 = vld [vmem:[%s226 + $0x178] sm:$0xff]
        %v278 = vld [vmem:[%s226 + $0x180] sm:$0xff]
        %v279 = vld [vmem:[%s226 + $0x188] sm:$0xff]
        %v280 = vld [vmem:[%s226 + $0x190] sm:$0xff]
        %v281 = vld [vmem:[%s226 + $0x198] sm:$0xff]
        %v282 = vld [vmem:[%s226 + $0x1a0] sm:$0xff]
        %v283 = vld [vmem:[%s226 + $0x1a8] sm:$0xff]
        %v284 = vld [vmem:[%s226 + $0x1b0] sm:$0xff]
        %v285 = vld [vmem:[%s226 + $0x1b8] sm:$0xff]
        %v286 = vld [vmem:[%s226 + $0x1c0] sm:$0xff]
        %v287 = vld [vmem:[%s226 + $0x1c8] sm:$0xff]
        %v288 = vld [vmem:[%s226 + $0x1d0] sm:$0xff]
        %v289 = vld [vmem:[%s226 + $0x1d8] sm:$0xff]
        %v290 = vld [vmem:[%s226 + $0x1e0] sm:$0xff]
        %v291 = vld [vmem:[%s226 + $0x1e8] sm:$0xff]
        %v292 = vld [vmem:[%s226 + $0x1f0] sm:$0xff]
        %v293 = vld [vmem:[%s226 + $0x1f8] sm:$0xff]
        %v294 = vld [vmem:[%s226 + $0x200] sm:$0xff]
        %v295 = vld [vmem:[%s226 + $0x208] sm:$0xff]
        %v296 = vld [vmem:[%s226 + $0x210] sm:$0xff]
        %v297 = vld [vmem:[%s226 + $0x218] sm:$0xff]
        %v298 = vld [vmem:[%s226 + $0x220] sm:$0xff]
        %v299 = vld [vmem:[%s226 + $0x228] sm:$0xff]
        %v300 = vld [vmem:[%s226 + $0x230] sm:$0xff]
        %v301 = vld [vmem:[%s226 + $0x238] sm:$0xff]
        %v302 = vld [vmem:[%s226 + $0x240] sm:$0xff]
        %v303 = vld [vmem:[%s226 + $0x248] sm:$0xff]
        %v304 = vld [vmem:[%s226 + $0x250] sm:$0xff]
        %v305 = vld [vmem:[%s226 + $0x258] sm:$0xff]
        %v306 = vld [vmem:[%s226 + $0x260] sm:$0xff]
        %v307 = vld [vmem:[%s226 + $0x268] sm:$0xff]
        %v308 = vld [vmem:[%s226 + $0x270] sm:$0xff]
        %v309 = vld [vmem:[%s226 + $0x278] sm:$0xff]
        %v310 = vld [vmem:[%s226 + $0x280] sm:$0xff]
        %v311 = vld [vmem:[%s226 + $0x288] sm:$0xff]
        %v312 = vld [vmem:[%s226 + $0x290] sm:$0xff]
        %v313 = vld [vmem:[%s226 + $0x298] sm:$0xff]
        %v314 = vld [vmem:[%s226 + $0x2a0] sm:$0xff]
        %v315 = vld [vmem:[%s226 + $0x2a8] sm:$0xff]
        %v316 = vld [vmem:[%s226 + $0x2b0] sm:$0xff]
        %v317 = vld [vmem:[%s226 + $0x2b8] sm:$0xff]
        %v318 = vld [vmem:[%s226 + $0x2c0] sm:$0xff]
        %v319 = vld [vmem:[%s226 + $0x2c8] sm:$0xff]
        %v320 = vld [vmem:[%s226 + $0x2d0] sm:$0xff]
        %v321 = vld [vmem:[%s226 + $0x2d8] sm:$0xff]
        %v322 = vld [vmem:[%s226 + $0x2e0] sm:$0xff]
        %v323 = vld [vmem:[%s226 + $0x2e8] sm:$0xff]
        %v324 = vld [vmem:[%s226 + $0x2f0] sm:$0xff]
        %v325 = vld [vmem:[%s226 + $0x2f8] sm:$0xff]
        %v326 = vld [vmem:[%s226 + $0x300] sm:$0xff]
        %v327 = vld [vmem:[%s226 + $0x308] sm:$0xff]
        %v328 = vld [vmem:[%s226 + $0x310] sm:$0xff]
        %v329 = vld [vmem:[%s226 + $0x318] sm:$0xff]
        %v330 = vld [vmem:[%s226 + $0x320] sm:$0xff]
        %v331 = vld [vmem:[%s226 + $0x328] sm:$0xff]
        %v332 = vld [vmem:[%s226 + $0x330] sm:$0xff]
        %v333 = vld [vmem:[%s226 + $0x338] sm:$0xff]
        %v334 = vld [vmem:[%s226 + $0x340] sm:$0xff]
        %v335 = vld [vmem:[%s226 + $0x348] sm:$0xff]
        %v336 = vld [vmem:[%s226 + $0x350] sm:$0xff]
        %v337 = vld [vmem:[%s226 + $0x358] sm:$0xff]
        %v338 = vld [vmem:[%s226 + $0x360] sm:$0xff]
        %v339 = vld [vmem:[%s226 + $0x368] sm:$0xff]
        %v340 = vld [vmem:[%s226 + $0x370] sm:$0xff]
        %v341 = vld [vmem:[%s226 + $0x378] sm:$0xff]
        %v342 = vld [vmem:[%s226 + $0x380] sm:$0xff]
        %v343 = vld [vmem:[%s226 + $0x388] sm:$0xff]
        %v344 = vld [vmem:[%s226 + $0x390] sm:$0xff]
        %v345 = vld [vmem:[%s226 + $0x398] sm:$0xff]
        %v346 = vld [vmem:[%s226 + $0x3a0] sm:$0xff]
        %v347 = vld [vmem:[%s226 + $0x3a8] sm:$0xff]
        %v348 = vld [vmem:[%s226 + $0x3b0] sm:$0xff]
        %v349 = vld [vmem:[%s226 + $0x3b8] sm:$0xff]
        %v350 = vld [vmem:[%s226 + $0x3c0] sm:$0xff]
        %v351 = vld [vmem:[%s226 + $0x3c8] sm:$0xff]
        %v352 = vld [vmem:[%s226 + $0x3d0] sm:$0xff]
        %v353 = vld [vmem:[%s226 + $0x3d8] sm:$0xff]
        %v354 = vld [vmem:[%s226 + $0x3e0] sm:$0xff]
        %v355 = vld [vmem:[%s226 + $0x3e8] sm:$0xff]
        %v356 = vld [vmem:[%s226 + $0x3f0] sm:$0xff]
        %v357 = vld [vmem:[%s226 + $0x3f8] sm:$0xff]
        %v358 = vld [vmem:[%s226 + $0x400] sm:$0xff]
        %v359 = vld [vmem:[%s226 + $0x408] sm:$0xff]
        %v360 = vld [vmem:[%s226 + $0x410] sm:$0xff]
        %v361 = vld [vmem:[%s226 + $0x418] sm:$0xff]
        %v362 = vld [vmem:[%s226 + $0x420] sm:$0xff]
        %v363 = vld [vmem:[%s226 + $0x428] sm:$0xff]
        %v364 = vld [vmem:[%s226 + $0x430] sm:$0xff]
        %v365 = vld [vmem:[%s226 + $0x438] sm:$0xff]
        %v366 = vld [vmem:[%s226 + $0x440] sm:$0xff]
        %v367 = vld [vmem:[%s226 + $0x448] sm:$0xff]
        %v368 = vld [vmem:[%s226 + $0x450] sm:$0xff]
        %v369 = vld [vmem:[%s226 + $0x458] sm:$0xff]
        %v370 = vld [vmem:[%s226 + $0x460] sm:$0xff]
        %v371 = vld [vmem:[%s226 + $0x468] sm:$0xff]
        %v372 = vld [vmem:[%s226 + $0x470] sm:$0xff]
        %v373 = vld [vmem:[%s226 + $0x478] sm:$0xff]
        %v374 = vld [vmem:[%s226 + $0x480] sm:$0xff]
        %v375 = vld [vmem:[%s226 + $0x488] sm:$0xff]
        %v376 = vld [vmem:[%s226 + $0x490] sm:$0xff]
        %v377 = vld [vmem:[%s226 + $0x498] sm:$0xff]
        %v378 = vld [vmem:[%s226 + $0x4a0] sm:$0xff]
        %v379 = vld [vmem:[%s226 + $0x4a8] sm:$0xff]
        %v380 = vld [vmem:[%s226 + $0x4b0] sm:$0xff]
        %v381 = vld [vmem:[%s226 + $0x4b8] sm:$0xff]
        %v382 = vld [vmem:[%s226 + $0x4c0] sm:$0xff]
        %v383 = vld [vmem:[%s226 + $0x4c8] sm:$0xff]
        %v384 = vld [vmem:[%s226 + $0x4d0] sm:$0xff]
        %v385 = vld [vmem:[%s226 + $0x4d8] sm:$0xff]
        %v386 = vld [vmem:[%s226 + $0x4e0] sm:$0xff]
        %v387 = vld [vmem:[%s226 + $0x4e8] sm:$0xff]
        %v388 = vld [vmem:[%s226 + $0x4f0] sm:$0xff]
        %v389 = vld [vmem:[%s226 + $0x4f8] sm:$0xff]
        %v390 = vld [vmem:[%s226 + $0x500] sm:$0xff]
        %v391 = vld [vmem:[%s226 + $0x508] sm:$0xff]
        %v392 = vld [vmem:[%s226 + $0x510] sm:$0xff]
        %v393 = vld [vmem:[%s226 + $0x518] sm:$0xff]
        %v394 = vld [vmem:[%s226 + $0x520] sm:$0xff]
        %v395 = vld [vmem:[%s226 + $0x528] sm:$0xff]
        %v396 = vld [vmem:[%s226 + $0x530] sm:$0xff]
        %v397 = vld [vmem:[%s226 + $0x538] sm:$0xff]
        %v398 = vld [vmem:[%s226 + $0x540] sm:$0xff]
        %v399 = vld [vmem:[%s226 + $0x548] sm:$0xff]
        %v400 = vld [vmem:[%s226 + $0x550] sm:$0xff]
        %v401 = vld [vmem:[%s226 + $0x558] sm:$0xff]
        %v402 = vld [vmem:[%s226 + $0x560] sm:$0xff]
        %v403 = vld [vmem:[%s226 + $0x568] sm:$0xff]
        %v404 = vld [vmem:[%s226 + $0x570] sm:$0xff]
        %v405 = vld [vmem:[%s226 + $0x578] sm:$0xff]
        %v406 = vld [vmem:[%s226 + $0x580] sm:$0xff]
        %v407 = vld [vmem:[%s226 + $0x588] sm:$0xff]
        %v408 = vld [vmem:[%s226 + $0x590] sm:$0xff]
        %v409 = vld [vmem:[%s226 + $0x598] sm:$0xff]
        %v410 = vld [vmem:[%s226 + $0x5a0] sm:$0xff]
        %v411 = vld [vmem:[%s226 + $0x5a8] sm:$0xff]
        %v412 = vld [vmem:[%s226 + $0x5b0] sm:$0xff]
        %v413 = vld [vmem:[%s226 + $0x5b8] sm:$0xff]
        %v414 = vld [vmem:[%s226 + $0x5c0] sm:$0xff]
        %v415 = vld [vmem:[%s226 + $0x5c8] sm:$0xff]
        %v416 = vld [vmem:[%s226 + $0x5d0] sm:$0xff]
        %v417 = vld [vmem:[%s226 + $0x5d8] sm:$0xff]
        %v418 = vld [vmem:[%s226 + $0x5e0] sm:$0xff]
        %v419 = vld [vmem:[%s226 + $0x5e8] sm:$0xff]
        %v420 = vld [vmem:[%s226 + $0x5f0] sm:$0xff]
        %v421 = vld [vmem:[%s226 + $0x5f8] sm:$0xff]
        %v422 = vld [vmem:[%s226 + $0x600] sm:$0xff]
        %v423 = vld [vmem:[%s226 + $0x608] sm:$0xff]
        %v424 = vld [vmem:[%s226 + $0x610] sm:$0xff]
        %v425 = vld [vmem:[%s226 + $0x618] sm:$0xff]
        %v426 = vld [vmem:[%s226 + $0x620] sm:$0xff]
        %v427 = vld [vmem:[%s226 + $0x628] sm:$0xff]
        %v428 = vld [vmem:[%s226 + $0x630] sm:$0xff]
        %v429 = vld [vmem:[%s226 + $0x638] sm:$0xff]
        %v430 = vld [vmem:[%s226 + $0x640] sm:$0xff]
        %v431 = vld [vmem:[%s226 + $0x648] sm:$0xff]
        %v432 = vld [vmem:[%s226 + $0x650] sm:$0xff]
        %v433 = vld [vmem:[%s226 + $0x658] sm:$0xff]
        %v434 = vld [vmem:[%s226 + $0x660] sm:$0xff]
        %v435 = vld [vmem:[%s226 + $0x668] sm:$0xff]
        %v436 = vld [vmem:[%s226 + $0x670] sm:$0xff]
        %v437 = vld [vmem:[%s226 + $0x678] sm:$0xff]
        %v438 = vld [vmem:[%s226 + $0x680] sm:$0xff]
        %v439 = vld [vmem:[%s226 + $0x688] sm:$0xff]
        %v440 = vld [vmem:[%s226 + $0x690] sm:$0xff]
        %v441 = vld [vmem:[%s226 + $0x698] sm:$0xff]
        %v442 = vld [vmem:[%s226 + $0x6a0] sm:$0xff]
        %v443 = vld [vmem:[%s226 + $0x6a8] sm:$0xff]
        %v444 = vld [vmem:[%s226 + $0x6b0] sm:$0xff]
        %v445 = vld [vmem:[%s226 + $0x6b8] sm:$0xff]
        %v446 = vld [vmem:[%s226 + $0x6c0] sm:$0xff]
        %v447 = vld [vmem:[%s226 + $0x6c8] sm:$0xff]
        %v448 = vld [vmem:[%s226 + $0x6d0] sm:$0xff]
        %v449 = vld [vmem:[%s226 + $0x6d8] sm:$0xff]
        %v450 = vld [vmem:[%s226 + $0x6e0] sm:$0xff]
        %v451 = vld [vmem:[%s226 + $0x6e8] sm:$0xff]
        %v452 = vld [vmem:[%s226 + $0x6f0] sm:$0xff]
        %v453 = vld [vmem:[%s226 + $0x6f8] sm:$0xff]
        %v454 = vpack.c.bf16 %v237, %v230
        %v455 = vpack.c.bf16 %v238, %v231
        %v456 = vpack.c.bf16 %v239, %v232
        %v457 = vpack.c.bf16 %v240, %v233
        %v458 = vpack.c.bf16 %v241, %v234
        %v459 = vpack.c.bf16 %v242, %v235
        %v460 = vpack.c.bf16 %v243, %v236
        %v461 = vpack.c.bf16 %v251, %v244
        %v462 = vpack.c.bf16 %v252, %v245
        %v463 = vpack.c.bf16 %v253, %v246
        %v464 = vpack.c.bf16 %v254, %v247
        %v465 = vpack.c.bf16 %v255, %v248
        %v466 = vpack.c.bf16 %v256, %v249
        %v467 = vpack.c.bf16 %v257, %v250
        %v468 = vpack.c.bf16 %v265, %v258
        %v469 = vpack.c.bf16 %v266, %v259
        %v470 = vpack.c.bf16 %v267, %v260
        %v471 = vpack.c.bf16 %v268, %v261
        %v472 = vpack.c.bf16 %v269, %v262
        %v473 = vpack.c.bf16 %v270, %v263
        %v474 = vpack.c.bf16 %v271, %v264
        %v475 = vpack.c.bf16 %v279, %v272
        %v476 = vpack.c.bf16 %v280, %v273
        %v477 = vpack.c.bf16 %v281, %v274
        %v478 = vpack.c.bf16 %v282, %v275
        %v479 = vpack.c.bf16 %v283, %v276
        %v480 = vpack.c.bf16 %v284, %v277
        %v481 = vpack.c.bf16 %v285, %v278
        %v482 = vpack.c.bf16 %v293, %v286
        %v483 = vpack.c.bf16 %v294, %v287
        %v484 = vpack.c.bf16 %v295, %v288
        %v485 = vpack.c.bf16 %v296, %v289
        %v486 = vpack.c.bf16 %v297, %v290
        %v487 = vpack.c.bf16 %v298, %v291
        %v488 = vpack.c.bf16 %v299, %v292
        %v489 = vpack.c.bf16 %v307, %v300
        %v490 = vpack.c.bf16 %v308, %v301
        %v491 = vpack.c.bf16 %v309, %v302
        %v492 = vpack.c.bf16 %v310, %v303
        %v493 = vpack.c.bf16 %v311, %v304
        %v494 = vpack.c.bf16 %v312, %v305
        %v495 = vpack.c.bf16 %v313, %v306
        %v496 = vpack.c.bf16 %v321, %v314
        %v497 = vpack.c.bf16 %v322, %v315
        %v498 = vpack.c.bf16 %v323, %v316
        %v499 = vpack.c.bf16 %v324, %v317
        %v500 = vpack.c.bf16 %v325, %v318
        %v501 = vpack.c.bf16 %v326, %v319
        %v502 = vpack.c.bf16 %v327, %v320
        %v503 = vpack.c.bf16 %v335, %v328
        %v504 = vpack.c.bf16 %v336, %v329
        %v505 = vpack.c.bf16 %v337, %v330
        %v506 = vpack.c.bf16 %v338, %v331
        %v507 = vpack.c.bf16 %v339, %v332
        %v508 = vpack.c.bf16 %v340, %v333
        %v509 = vpack.c.bf16 %v341, %v334
        %v510 = vpack.c.bf16 %v349, %v342
        %v511 = vpack.c.bf16 %v350, %v343
        %v512 = vpack.c.bf16 %v351, %v344
        %v513 = vpack.c.bf16 %v352, %v345
        %v514 = vpack.c.bf16 %v353, %v346
        %v515 = vpack.c.bf16 %v354, %v347
        %v516 = vpack.c.bf16 %v355, %v348
        %v517 = vpack.c.bf16 %v363, %v356
        %v518 = vpack.c.bf16 %v364, %v357
        %v519 = vpack.c.bf16 %v365, %v358
        %v520 = vpack.c.bf16 %v366, %v359
        %v521 = vpack.c.bf16 %v367, %v360
        %v522 = vpack.c.bf16 %v368, %v361
        %v523 = vpack.c.bf16 %v369, %v362
        %v524 = vpack.c.bf16 %v377, %v370
        %v525 = vpack.c.bf16 %v378, %v371
        %v526 = vpack.c.bf16 %v379, %v372
        %v527 = vpack.c.bf16 %v380, %v373
        %v528 = vpack.c.bf16 %v381, %v374
        %v529 = vpack.c.bf16 %v382, %v375
        %v530 = vpack.c.bf16 %v383, %v376
        %v531 = vpack.c.bf16 %v391, %v384
        %v532 = vpack.c.bf16 %v392, %v385
        %v533 = vpack.c.bf16 %v393, %v386
        %v534 = vpack.c.bf16 %v394, %v387
        %v535 = vpack.c.bf16 %v395, %v388
        %v536 = vpack.c.bf16 %v396, %v389
        %v537 = vpack.c.bf16 %v397, %v390
        %v538 = vpack.c.bf16 %v405, %v398
        %v539 = vpack.c.bf16 %v406, %v399
        %v540 = vpack.c.bf16 %v407, %v400
        %v541 = vpack.c.bf16 %v408, %v401
        %v542 = vpack.c.bf16 %v409, %v402
        %v543 = vpack.c.bf16 %v410, %v403
        %v544 = vpack.c.bf16 %v411, %v404
        %v545 = vpack.c.bf16 %v419, %v412
        %v546 = vpack.c.bf16 %v420, %v413
        %v547 = vpack.c.bf16 %v421, %v414
        %v548 = vpack.c.bf16 %v422, %v415
        %v549 = vpack.c.bf16 %v423, %v416
        %v550 = vpack.c.bf16 %v424, %v417
        %v551 = vpack.c.bf16 %v425, %v418
        %v552 = vpack.c.bf16 %v433, %v426
        %v553 = vpack.c.bf16 %v434, %v427
        %v554 = vpack.c.bf16 %v435, %v428
        %v555 = vpack.c.bf16 %v436, %v429
        %v556 = vpack.c.bf16 %v437, %v430
        %v557 = vpack.c.bf16 %v438, %v431
        %v558 = vpack.c.bf16 %v439, %v432
        %v559 = vpack.c.bf16 %v447, %v440
        %v560 = vpack.c.bf16 %v448, %v441
        %v561 = vpack.c.bf16 %v449, %v442
        %v562 = vpack.c.bf16 %v450, %v443
        %v563 = vpack.c.bf16 %v451, %v444
        %v564 = vpack.c.bf16 %v452, %v445
        %v565 = vpack.c.bf16 %v453, %v446
        %v566 = vld [vmem:[%s1] sm:$0xf]
        %v567 = vld [vmem:[%s1 + $0x4] sm:$0xf]
        %v568 = vld [vmem:[%s1 + $0x8] sm:$0xf]
        %v569 = vld [vmem:[%s1 + $0xc] sm:$0xf]
        %v570 = vld [vmem:[%s1 + $0x10] sm:$0xf]
        %v571 = vld [vmem:[%s1 + $0x14] sm:$0xf]
        %v572 = vld [vmem:[%s1 + $0x18] sm:$0xf]
        %v573 = vld [vmem:[%s1 + $0x1c] sm:$0xf]
        %v574 = vld [vmem:[%s1 + $0x20] sm:$0xf]
        %v575 = vld [vmem:[%s1 + $0x24] sm:$0xf]
        %v576 = vld [vmem:[%s1 + $0x28] sm:$0xf]
        %v577 = vld [vmem:[%s1 + $0x2c] sm:$0xf]
        %v578 = vld [vmem:[%s1 + $0x30] sm:$0xf]
        %v579 = vld [vmem:[%s1 + $0x34] sm:$0xf]
        %v580 = vld [vmem:[%s1 + $0x38] sm:$0xf]
        %v581 = vld [vmem:[%s1 + $0x3c] sm:$0xf]
        %v582 = vld [vmem:[%s1 + $0x40] sm:$0xf]
        %v583 = vld [vmem:[%s1 + $0x44] sm:$0xf]
        %v584 = vld [vmem:[%s1 + $0x48] sm:$0xf]
        %v585 = vld [vmem:[%s1 + $0x4c] sm:$0xf]
        %v586 = vld [vmem:[%s1 + $0x50] sm:$0xf]
        %v587 = vld [vmem:[%s1 + $0x54] sm:$0xf]
        %v588 = vld [vmem:[%s1 + $0x58] sm:$0xf]
        %v589 = vld [vmem:[%s1 + $0x5c] sm:$0xf]
        %v590 = vld [vmem:[%s1 + $0x60] sm:$0xf]
        %v591 = vld [vmem:[%s1 + $0x64] sm:$0xf]
        %v592 = vld [vmem:[%s1 + $0x68] sm:$0xf]
        %v593 = vld [vmem:[%s1 + $0x6c] sm:$0xf]
        %v594 = vld [vmem:[%s1 + $0x70] sm:$0xf]
        %v595 = vld [vmem:[%s1 + $0x74] sm:$0xf]
        %v596 = vld [vmem:[%s1 + $0x78] sm:$0xf]
        %v597 = vld [vmem:[%s1 + $0x7c] sm:$0xf]
        %v598 = vld [vmem:[%s1 + $0x80] sm:$0xf]
        %v599 = vld [vmem:[%s1 + $0x84] sm:$0xf]
        %v600 = vld [vmem:[%s1 + $0x88] sm:$0xf]
        %v601 = vld [vmem:[%s1 + $0x8c] sm:$0xf]
        %v602 = vld [vmem:[%s1 + $0x90] sm:$0xf]
        %v603 = vld [vmem:[%s1 + $0x94] sm:$0xf]
        %v604 = vld [vmem:[%s1 + $0x98] sm:$0xf]
        %v605 = vld [vmem:[%s1 + $0x9c] sm:$0xf]
        %v606 = vld [vmem:[%s1 + $0xa0] sm:$0xf]
        %v607 = vld [vmem:[%s1 + $0xa4] sm:$0xf]
        %v608 = vld [vmem:[%s1 + $0xa8] sm:$0xf]
        %v609 = vld [vmem:[%s1 + $0xac] sm:$0xf]
        %v610 = vld [vmem:[%s1 + $0xb0] sm:$0xf]
        %v611 = vld [vmem:[%s1 + $0xb4] sm:$0xf]
        %v612 = vld [vmem:[%s1 + $0xb8] sm:$0xf]
        %v613 = vld [vmem:[%s1 + $0xbc] sm:$0xf]
        %v614 = vld [vmem:[%s1 + $0xc0] sm:$0xf]
        %v615 = vld [vmem:[%s1 + $0xc4] sm:$0xf]
        %v616 = vld [vmem:[%s1 + $0xc8] sm:$0xf]
        %v617 = vld [vmem:[%s1 + $0xcc] sm:$0xf]
        %v618 = vld [vmem:[%s1 + $0xd0] sm:$0xf]
        %v619 = vld [vmem:[%s1 + $0xd4] sm:$0xf]
        %v620 = vld [vmem:[%s1 + $0xd8] sm:$0xf]
        %v621 = vld [vmem:[%s1 + $0xdc] sm:$0xf]
        %v622 = vld [vmem:[%s1 + $0xe0] sm:$0xf]
        %v623 = vld [vmem:[%s1 + $0xe4] sm:$0xf]
        %v624 = vld [vmem:[%s1 + $0xe8] sm:$0xf]
        %v625 = vld [vmem:[%s1 + $0xec] sm:$0xf]
        %v626 = vld [vmem:[%s1 + $0xf0] sm:$0xf]
        %v627 = vld [vmem:[%s1 + $0xf4] sm:$0xf]
        %v628 = vld [vmem:[%s1 + $0xf8] sm:$0xf]
        %v629 = vld [vmem:[%s1 + $0xfc] sm:$0xf]
        %v630 = vld [vmem:[%s1 + $0x100] sm:$0xf]
        %v631 = vld [vmem:[%s1 + $0x104] sm:$0xf]
        %v632 = vld [vmem:[%s1 + $0x108] sm:$0xf]
        %v633 = vld [vmem:[%s1 + $0x10c] sm:$0xf]
        %v634 = vld [vmem:[%s1 + $0x110] sm:$0xf]
        %v635 = vld [vmem:[%s1 + $0x114] sm:$0xf]
        %v636 = vld [vmem:[%s1 + $0x118] sm:$0xf]
        %v637 = vld [vmem:[%s1 + $0x11c] sm:$0xf]
        %v638 = vld [vmem:[%s1 + $0x120] sm:$0xf]
        %v639 = vld [vmem:[%s1 + $0x124] sm:$0xf]
        %v640 = vld [vmem:[%s1 + $0x128] sm:$0xf]
        %v641 = vld [vmem:[%s1 + $0x12c] sm:$0xf]
        %v642 = vld [vmem:[%s1 + $0x130] sm:$0xf]
        %v643 = vld [vmem:[%s1 + $0x134] sm:$0xf]
        %v644 = vld [vmem:[%s1 + $0x138] sm:$0xf]
        %v645 = vld [vmem:[%s1 + $0x13c] sm:$0xf]
        %v646 = vld [vmem:[%s1 + $0x140] sm:$0xf]
        %v647 = vld [vmem:[%s1 + $0x144] sm:$0xf]
        %v648 = vld [vmem:[%s1 + $0x148] sm:$0xf]
        %v649 = vld [vmem:[%s1 + $0x14c] sm:$0xf]
        %v650 = vld [vmem:[%s1 + $0x150] sm:$0xf]
        %v651 = vld [vmem:[%s1 + $0x154] sm:$0xf]
        %v652 = vld [vmem:[%s1 + $0x158] sm:$0xf]
        %v653 = vld [vmem:[%s1 + $0x15c] sm:$0xf]
        %v654 = vld [vmem:[%s1 + $0x160] sm:$0xf]
        %v655 = vld [vmem:[%s1 + $0x164] sm:$0xf]
        %v656 = vld [vmem:[%s1 + $0x168] sm:$0xf]
        %v657 = vld [vmem:[%s1 + $0x16c] sm:$0xf]
        %v658 = vld [vmem:[%s1 + $0x170] sm:$0xf]
        %v659 = vld [vmem:[%s1 + $0x174] sm:$0xf]
        %v660 = vld [vmem:[%s1 + $0x178] sm:$0xf]
        %v661 = vld [vmem:[%s1 + $0x17c] sm:$0xf]
        %v662 = vld [vmem:[%s1 + $0x180] sm:$0xf]
        %v663 = vld [vmem:[%s1 + $0x184] sm:$0xf]
        %v664 = vld [vmem:[%s2] sm:$0x1]
        %v666 = vlaneseq
        %v667 = vshrl.u32 %v666, 7
        %v668 = vsub.s32 0, %v667
        %v669 = vrot.slane %v664, %v668
        %v769 = vunpack.c.l.b16 %v566
        %v770 = vunpack.c.l.b16 %v567
        %v771 = vunpack.c.l.b16 %v568
        %v772 = vunpack.c.l.b16 %v569
        %v773 = vunpack.c.l.b16 %v570
        %v774 = vunpack.c.l.b16 %v571
        %v775 = vunpack.c.l.b16 %v572
        %v776 = vunpack.c.l.b16 %v573
        %v777 = vunpack.c.l.b16 %v574
        %v778 = vunpack.c.l.b16 %v575
        %v779 = vunpack.c.l.b16 %v576
        %v780 = vunpack.c.l.b16 %v577
        %v781 = vunpack.c.l.b16 %v578
        %v782 = vunpack.c.l.b16 %v579
        %v783 = vunpack.c.l.b16 %v580
        %v784 = vunpack.c.l.b16 %v581
        %v785 = vunpack.c.l.b16 %v582
        %v786 = vunpack.c.l.b16 %v583
        %v787 = vunpack.c.l.b16 %v584
        %v788 = vunpack.c.l.b16 %v585
        %v789 = vunpack.c.l.b16 %v586
        %v790 = vunpack.c.l.b16 %v587
        %v791 = vunpack.c.l.b16 %v588
        %v792 = vunpack.c.l.b16 %v589
        %v793 = vunpack.c.l.b16 %v590
        %v794 = vunpack.c.l.b16 %v591
        %v795 = vunpack.c.l.b16 %v592
        %v796 = vunpack.c.l.b16 %v593
        %v797 = vunpack.c.l.b16 %v594
        %v798 = vunpack.c.l.b16 %v595
        %v799 = vunpack.c.l.b16 %v596
        %v800 = vunpack.c.l.b16 %v597
        %v801 = vunpack.c.l.b16 %v598
        %v802 = vunpack.c.l.b16 %v599
        %v803 = vunpack.c.l.b16 %v600
        %v804 = vunpack.c.l.b16 %v601
        %v805 = vunpack.c.l.b16 %v602
        %v806 = vunpack.c.l.b16 %v603
        %v807 = vunpack.c.l.b16 %v604
        %v808 = vunpack.c.l.b16 %v605
        %v809 = vunpack.c.l.b16 %v606
        %v810 = vunpack.c.l.b16 %v607
        %v811 = vunpack.c.l.b16 %v608
        %v812 = vunpack.c.l.b16 %v609
        %v813 = vunpack.c.l.b16 %v610
        %v814 = vunpack.c.l.b16 %v611
        %v815 = vunpack.c.l.b16 %v612
        %v816 = vunpack.c.l.b16 %v613
        %v817 = vunpack.c.l.b16 %v614
        %v818 = vunpack.c.l.b16 %v615
        %v819 = vunpack.c.l.b16 %v616
        %v820 = vunpack.c.l.b16 %v617
        %v821 = vunpack.c.l.b16 %v618
        %v822 = vunpack.c.l.b16 %v619
        %v823 = vunpack.c.l.b16 %v620
        %v824 = vunpack.c.l.b16 %v621
        %v825 = vunpack.c.l.b16 %v622
        %v826 = vunpack.c.l.b16 %v623
        %v827 = vunpack.c.l.b16 %v624
        %v828 = vunpack.c.l.b16 %v625
        %v829 = vunpack.c.l.b16 %v626
        %v830 = vunpack.c.l.b16 %v627
        %v831 = vunpack.c.l.b16 %v628
        %v832 = vunpack.c.l.b16 %v629
        %v833 = vunpack.c.l.b16 %v630
        %v834 = vunpack.c.l.b16 %v631
        %v835 = vunpack.c.l.b16 %v632
        %v836 = vunpack.c.l.b16 %v633
        %v837 = vunpack.c.l.b16 %v634
        %v838 = vunpack.c.l.b16 %v635
        %v839 = vunpack.c.l.b16 %v636
        %v840 = vunpack.c.l.b16 %v637
        %v841 = vunpack.c.l.b16 %v638
        %v842 = vunpack.c.l.b16 %v639
        %v843 = vunpack.c.l.b16 %v640
        %v844 = vunpack.c.l.b16 %v641
        %v845 = vunpack.c.l.b16 %v642
        %v846 = vunpack.c.l.b16 %v643
        %v847 = vunpack.c.l.b16 %v644
        %v848 = vunpack.c.l.b16 %v645
        %v849 = vunpack.c.l.b16 %v646
        %v850 = vunpack.c.l.b16 %v647
        %v851 = vunpack.c.l.b16 %v648
        %v852 = vunpack.c.l.b16 %v649
        %v853 = vunpack.c.l.b16 %v650
        %v854 = vunpack.c.l.b16 %v651
        %v855 = vunpack.c.l.b16 %v652
        %v856 = vunpack.c.l.b16 %v653
        %v857 = vunpack.c.l.b16 %v654
        %v858 = vunpack.c.l.b16 %v655
        %v859 = vunpack.c.l.b16 %v656
        %v860 = vunpack.c.l.b16 %v657
        %v861 = vunpack.c.l.b16 %v658
        %v862 = vunpack.c.l.b16 %v659
        %v863 = vunpack.c.l.b16 %v660
        %v864 = vunpack.c.l.b16 %v661
        %v865 = vunpack.c.l.b16 %v662
        %v866 = vunpack.c.l.b16 %v663
        %v867 = vpack.c.b16 %v770, %v769
        %v868 = vpack.c.b16 %v772, %v771
        %v869 = vpack.c.b16 %v774, %v773
        %v870 = vpack.c.b16 %v776, %v775
        %v871 = vpack.c.b16 %v778, %v777
        %v872 = vpack.c.b16 %v780, %v779
        %v873 = vpack.c.b16 %v782, %v781
        %v874 = vpack.c.b16 %v784, %v783
        %v875 = vpack.c.b16 %v786, %v785
        %v876 = vpack.c.b16 %v788, %v787
        %v877 = vpack.c.b16 %v790, %v789
        %v878 = vpack.c.b16 %v792, %v791
        %v879 = vpack.c.b16 %v794, %v793
        %v880 = vpack.c.b16 %v796, %v795
        %v881 = vpack.c.b16 %v798, %v797
        %v882 = vpack.c.b16 %v800, %v799
        %v883 = vpack.c.b16 %v802, %v801
        %v884 = vpack.c.b16 %v804, %v803
        %v885 = vpack.c.b16 %v806, %v805
        %v886 = vpack.c.b16 %v808, %v807
        %v887 = vpack.c.b16 %v810, %v809
        %v888 = vpack.c.b16 %v812, %v811
        %v889 = vpack.c.b16 %v814, %v813
        %v890 = vpack.c.b16 %v816, %v815
        %v891 = vpack.c.b16 %v818, %v817
        %v892 = vpack.c.b16 %v820, %v819
        %v893 = vpack.c.b16 %v822, %v821
        %v894 = vpack.c.b16 %v824, %v823
        %v895 = vpack.c.b16 %v826, %v825
        %v896 = vpack.c.b16 %v828, %v827
        %v897 = vpack.c.b16 %v830, %v829
        %v898 = vpack.c.b16 %v832, %v831
        %v899 = vpack.c.b16 %v834, %v833
        %v900 = vpack.c.b16 %v836, %v835
        %v901 = vpack.c.b16 %v838, %v837
        %v902 = vpack.c.b16 %v840, %v839
        %v903 = vpack.c.b16 %v842, %v841
        %v904 = vpack.c.b16 %v844, %v843
        %v905 = vpack.c.b16 %v846, %v845
        %v906 = vpack.c.b16 %v848, %v847
        %v907 = vpack.c.b16 %v850, %v849
        %v908 = vpack.c.b16 %v852, %v851
        %v909 = vpack.c.b16 %v854, %v853
        %v910 = vpack.c.b16 %v856, %v855
        %v911 = vpack.c.b16 %v858, %v857
        %v912 = vpack.c.b16 %v860, %v859
        %v913 = vpack.c.b16 %v862, %v861
        %v914 = vpack.c.b16 %v864, %v863
        %v915 = vpack.c.b16 %v866, %v865
        %vm965 = vcmask 130048
        %v967 = vsel %vm965, %v460, 0
        %v970 = vsel %vm965, %v467, 0
        %v973 = vsel %vm965, %v474, 0
        %v976 = vsel %vm965, %v481, 0
        %v979 = vsel %vm965, %v488, 0
        %v982 = vsel %vm965, %v495, 0
        %v985 = vsel %vm965, %v502, 0
        %v988 = vsel %vm965, %v509, 0
        %v991 = vsel %vm965, %v516, 0
        %v994 = vsel %vm965, %v523, 0
        %v997 = vsel %vm965, %v530, 0
        %v1000 = vsel %vm965, %v537, 0
        %v1003 = vsel %vm965, %v544, 0
        %v1006 = vsel %vm965, %v551, 0
        %v1009 = vsel %vm965, %v558, 0
        %v1012 = vsel %vm965, %v565, 0
        %1014 = vmatprep.subr.bf16.mxu0 0
        %1015 = vmatpush1.bf16.msra.mxu0 %v867
        %1016 = vmatprep.subr.bf16.mxu0 0
        %1017 = vmatpush1.bf16.msra.mxu0 %v868
        %1018 = vmatprep.subr.bf16.mxu0 0
        %1019 = vmatpush1.bf16.msra.mxu0 %v869
        %1020 = vmatprep.subr.bf16.mxu0 0
        %1021 = vmatpush1.bf16.msra.mxu0 %v870
        %1022 = vmatprep.subr.bf16.mxu0 0
        %1023 = vmatpush1.bf16.msra.mxu0 %v871
        %1024 = vmatprep.subr.bf16.mxu0 0
        %1025 = vmatpush1.bf16.msra.mxu0 %v872
        %1026 = vmatprep.subr.bf16.mxu0 0
        %1027 = vmatpush1.bf16.msra.mxu0 %v873
        %1028 = vmatprep.subr.bf16.mxu0 0
        %1029 = vmatpush1.bf16.msra.mxu0 %v874
        %1030 = vmatprep.subr.bf16.mxu0 0
        %1031 = vmatpush1.bf16.msra.mxu0 %v875
        %1032 = vmatprep.subr.bf16.mxu0 0
        %1033 = vmatpush1.bf16.msra.mxu0 %v876
        %1034 = vmatprep.subr.bf16.mxu0 0
        %1035 = vmatpush1.bf16.msra.mxu0 %v877
        %1036 = vmatprep.subr.bf16.mxu0 0
        %1037 = vmatpush1.bf16.msra.mxu0 %v878
        %1038 = vmatprep.subr.bf16.mxu0 0
        %1039 = vmatpush1.bf16.msra.mxu0 %v879
        %1040 = vmatprep.subr.bf16.mxu0 0
        %1041 = vmatpush1.bf16.msra.mxu0 %v880
        %1042 = vmatprep.subr.bf16.mxu0 0
        %1043 = vmatpush1.bf16.msra.mxu0 %v881
        %1044 = vmatprep.subr.bf16.mxu0 0
        %1045 = vmatpush1.bf16.msra.mxu0 %v882
        %1046 = vmatprep.mubr.bf16.mxu0 %v455
        %1047 = vmatmul.mubr.bf16.gmra.mrb[0].mxu0 %v454
        %v1048 = vpop.f32.mrb[0].mxu0
        %v1049 = vadd.f32 %v669, %v1048
        %v1050 = vpop.f32.mrb[0].mxu0
        %v1051 = vpop.f32.mrb[0].mxu0
        %v1052 = vadd.f32 %v669, %v1051
        %v1053 = vpop.f32.mrb[0].mxu0
        %1054 = vmatprep.mubr.bf16.mxu0 %v462
        %1055 = vmatmul.mubr.bf16.gmra.mrb[0].mxu0 %v461
        %v1056 = vpop.f32.mrb[0].mxu0
        %v1057 = vadd.f32 %v669, %v1056
        %v1058 = vpop.f32.mrb[0].mxu0
        %v1059 = vpop.f32.mrb[0].mxu0
        %v1060 = vadd.f32 %v669, %v1059
        %v1061 = vpop.f32.mrb[0].mxu0
        %1062 = vmatprep.mubr.bf16.mxu0 %v469
        %1063 = vmatmul.mubr.bf16.gmra.mrb[0].mxu0 %v468
        %v1064 = vpop.f32.mrb[0].mxu0
        %v1065 = vadd.f32 %v669, %v1064
        %v1066 = vpop.f32.mrb[0].mxu0
        %v1067 = vpop.f32.mrb[0].mxu0
        %v1068 = vadd.f32 %v669, %v1067
        %v1069 = vpop.f32.mrb[0].mxu0
        %1070 = vmatprep.mubr.bf16.mxu0 %v476
        %1071 = vmatmul.mubr.bf16.gmra.mrb[0].mxu0 %v475
        %v1072 = vpop.f32.mrb[0].mxu0
        %v1073 = vadd.f32 %v669, %v1072
        %v1074 = vpop.f32.mrb[0].mxu0
        %v1075 = vpop.f32.mrb[0].mxu0
        %v1076 = vadd.f32 %v669, %v1075
        %v1077 = vpop.f32.mrb[0].mxu0
        %1078 = vmatprep.mubr.bf16.mxu0 %v483
        %1079 = vmatmul.mubr.bf16.gmra.mrb[0].mxu0 %v482
        %v1080 = vpop.f32.mrb[0].mxu0
        %v1081 = vadd.f32 %v669, %v1080
        %v1082 = vpop.f32.mrb[0].mxu0
        %v1083 = vpop.f32.mrb[0].mxu0
        %v1084 = vadd.f32 %v669, %v1083
        %v1085 = vpop.f32.mrb[0].mxu0
        %1086 = vmatprep.mubr.bf16.mxu0 %v490
        %1087 = vmatmul.mubr.bf16.gmra.mrb[0].mxu0 %v489
        %v1088 = vpop.f32.mrb[0].mxu0
        %v1089 = vadd.f32 %v669, %v1088
        %v1090 = vpop.f32.mrb[0].mxu0
        %v1091 = vpop.f32.mrb[0].mxu0
        %v1092 = vadd.f32 %v669, %v1091
        %v1093 = vpop.f32.mrb[0].mxu0
        %1094 = vmatprep.mubr.bf16.mxu0 %v497
        %1095 = vmatmul.mubr.bf16.gmra.mrb[0].mxu0 %v496
        %v1096 = vpop.f32.mrb[0].mxu0
        %v1097 = vadd.f32 %v669, %v1096
        %v1098 = vpop.f32.mrb[0].mxu0
        %v1099 = vpop.f32.mrb[0].mxu0
        %v1100 = vadd.f32 %v669, %v1099
        %v1101 = vpop.f32.mrb[0].mxu0
        %1102 = vmatprep.mubr.bf16.mxu0 %v504
        %1103 = vmatmul.mubr.bf16.gmra.mrb[0].mxu0 %v503
        %v1104 = vpop.f32.mrb[0].mxu0
        %v1105 = vadd.f32 %v669, %v1104
        %v1106 = vpop.f32.mrb[0].mxu0
        %v1107 = vpop.f32.mrb[0].mxu0
        %v1108 = vadd.f32 %v669, %v1107
        %v1109 = vpop.f32.mrb[0].mxu0
        %1110 = vmatprep.mubr.bf16.mxu0 %v511
        %1111 = vmatmul.mubr.bf16.gmra.mrb[0].mxu0 %v510
        %v1112 = vpop.f32.mrb[0].mxu0
        %v1113 = vadd.f32 %v669, %v1112
        %v1114 = vpop.f32.mrb[0].mxu0
        %v1115 = vpop.f32.mrb[0].mxu0
        %v1116 = vadd.f32 %v669, %v1115
        %v1117 = vpop.f32.mrb[0].mxu0
        %1118 = vmatprep.mubr.bf16.mxu0 %v518
        %1119 = vmatmul.mubr.bf16.gmra.mrb[0].mxu0 %v517
        %v1120 = vpop.f32.mrb[0].mxu0
        %v1121 = vadd.f32 %v669, %v1120
        %v1122 = vpop.f32.mrb[0].mxu0
        %v1123 = vpop.f32.mrb[0].mxu0
        %v1124 = vadd.f32 %v669, %v1123
        %v1125 = vpop.f32.mrb[0].mxu0
        %1126 = vmatprep.mubr.bf16.mxu0 %v525
        %1127 = vmatmul.mubr.bf16.gmra.mrb[0].mxu0 %v524
        %v1128 = vpop.f32.mrb[0].mxu0
        %v1129 = vadd.f32 %v669, %v1128
        %v1130 = vpop.f32.mrb[0].mxu0
        %v1131 = vpop.f32.mrb[0].mxu0
        %v1132 = vadd.f32 %v669, %v1131
        %v1133 = vpop.f32.mrb[0].mxu0
        %1134 = vmatprep.mubr.bf16.mxu0 %v532
        %1135 = vmatmul.mubr.bf16.gmra.mrb[0].mxu0 %v531
        %v1136 = vpop.f32.mrb[0].mxu0
        %v1137 = vadd.f32 %v669, %v1136
        %v1138 = vpop.f32.mrb[0].mxu0
        %v1139 = vpop.f32.mrb[0].mxu0
        %v1140 = vadd.f32 %v669, %v1139
        %v1141 = vpop.f32.mrb[0].mxu0
        %1142 = vmatprep.mubr.bf16.mxu0 %v539
        %1143 = vmatmul.mubr.bf16.gmra.mrb[0].mxu0 %v538
        %v1144 = vpop.f32.mrb[0].mxu0
        %v1145 = vadd.f32 %v669, %v1144
        %v1146 = vpop.f32.mrb[0].mxu0
        %v1147 = vpop.f32.mrb[0].mxu0
        %v1148 = vadd.f32 %v669, %v1147
        %v1149 = vpop.f32.mrb[0].mxu0
        %1150 = vmatprep.mubr.bf16.mxu0 %v546
        %1151 = vmatmul.mubr.bf16.gmra.mrb[0].mxu0 %v545
        %v1152 = vpop.f32.mrb[0].mxu0
        %v1153 = vadd.f32 %v669, %v1152
        %v1154 = vpop.f32.mrb[0].mxu0
        %v1155 = vpop.f32.mrb[0].mxu0
        %v1156 = vadd.f32 %v669, %v1155
        %v1157 = vpop.f32.mrb[0].mxu0
        %1158 = vmatprep.mubr.bf16.mxu0 %v553
        %1159 = vmatmul.mubr.bf16.gmra.mrb[0].mxu0 %v552
        %v1160 = vpop.f32.mrb[0].mxu0
        %v1161 = vadd.f32 %v669, %v1160
        %v1162 = vpop.f32.mrb[0].mxu0
        %v1163 = vpop.f32.mrb[0].mxu0
        %v1164 = vadd.f32 %v669, %v1163
        %v1165 = vpop.f32.mrb[0].mxu0
        %1166 = vmatprep.mubr.bf16.mxu0 %v560
        %1167 = vmatmul.mubr.bf16.gmra.mrb[0].mxu0 %v559
        %v1168 = vpop.f32.mrb[0].mxu0
        %v1169 = vadd.f32 %v669, %v1168
        %v1170 = vpop.f32.mrb[0].mxu0
        %v1171 = vpop.f32.mrb[0].mxu0
        %v1172 = vadd.f32 %v669, %v1171
        %v1173 = vpop.f32.mrb[0].mxu0
        %1174 = vdwg.mxu0
        %1175 = vmatprep.subr.bf16.mxu0 0
        %1176 = vmatpush1.bf16.msra.mxu0 %v883
        %1177 = vmatprep.subr.bf16.mxu0 0
        %1178 = vmatpush1.bf16.msra.mxu0 %v884
        %1179 = vmatprep.subr.bf16.mxu0 0
        %1180 = vmatpush1.bf16.msra.mxu0 %v885
        %1181 = vmatprep.subr.bf16.mxu0 0
        %1182 = vmatpush1.bf16.msra.mxu0 %v886
        %1183 = vmatprep.subr.bf16.mxu0 0
        %1184 = vmatpush1.bf16.msra.mxu0 %v887
        %1185 = vmatprep.subr.bf16.mxu0 0
        %1186 = vmatpush1.bf16.msra.mxu0 %v888
        %1187 = vmatprep.subr.bf16.mxu0 0
        %1188 = vmatpush1.bf16.msra.mxu0 %v889
        %1189 = vmatprep.subr.bf16.mxu0 0
        %1190 = vmatpush1.bf16.msra.mxu0 %v890
        %1191 = vmatprep.subr.bf16.mxu0 0
        %1192 = vmatpush1.bf16.msra.mxu0 %v891
        %1193 = vmatprep.subr.bf16.mxu0 0
        %1194 = vmatpush1.bf16.msra.mxu0 %v892
        %1195 = vmatprep.subr.bf16.mxu0 0
        %1196 = vmatpush1.bf16.msra.mxu0 %v893
        %1197 = vmatprep.subr.bf16.mxu0 0
        %1198 = vmatpush1.bf16.msra.mxu0 %v894
        %1199 = vmatprep.subr.bf16.mxu0 0
        %1200 = vmatpush1.bf16.msra.mxu0 %v895
        %1201 = vmatprep.subr.bf16.mxu0 0
        %1202 = vmatpush1.bf16.msra.mxu0 %v896
        %1203 = vmatprep.subr.bf16.mxu0 0
        %1204 = vmatpush1.bf16.msra.mxu0 %v897
        %1205 = vmatprep.subr.bf16.mxu0 0
        %1206 = vmatpush1.bf16.msra.mxu0 %v898
        %1207 = vmatprep.mubr.bf16.mxu0 %v457
        %1208 = vmatmul.mubr.bf16.gmra.mrb[0].mxu0 %v456
        %v1209 = vpop.f32.mrb[0].mxu0
        %v1210 = vadd.f32 %v1049, %v1209
        %v1211 = vpop.f32.mrb[0].mxu0
        %v1212 = vpop.f32.mrb[0].mxu0
        %v1213 = vadd.f32 %v1052, %v1212
        %v1214 = vpop.f32.mrb[0].mxu0
        %1215 = vmatprep.mubr.bf16.mxu0 %v464
        %1216 = vmatmul.mubr.bf16.gmra.mrb[0].mxu0 %v463
        %v1217 = vpop.f32.mrb[0].mxu0
        %v1218 = vadd.f32 %v1057, %v1217
        %v1219 = vpop.f32.mrb[0].mxu0
        %v1220 = vpop.f32.mrb[0].mxu0
        %v1221 = vadd.f32 %v1060, %v1220
        %v1222 = vpop.f32.mrb[0].mxu0
        %1223 = vmatprep.mubr.bf16.mxu0 %v471
        %1224 = vmatmul.mubr.bf16.gmra.mrb[0].mxu0 %v470
        %v1225 = vpop.f32.mrb[0].mxu0
        %v1226 = vadd.f32 %v1065, %v1225
        %v1227 = vpop.f32.mrb[0].mxu0
        %v1228 = vpop.f32.mrb[0].mxu0
        %v1229 = vadd.f32 %v1068, %v1228
        %v1230 = vpop.f32.mrb[0].mxu0
        %1231 = vmatprep.mubr.bf16.mxu0 %v478
        %1232 = vmatmul.mubr.bf16.gmra.mrb[0].mxu0 %v477
        %v1233 = vpop.f32.mrb[0].mxu0
        %v1234 = vadd.f32 %v1073, %v1233
        %v1235 = vpop.f32.mrb[0].mxu0
        %v1236 = vpop.f32.mrb[0].mxu0
        %v1237 = vadd.f32 %v1076, %v1236
        %v1238 = vpop.f32.mrb[0].mxu0
        %1239 = vmatprep.mubr.bf16.mxu0 %v485
        %1240 = vmatmul.mubr.bf16.gmra.mrb[0].mxu0 %v484
        %v1241 = vpop.f32.mrb[0].mxu0
        %v1242 = vadd.f32 %v1081, %v1241
        %v1243 = vpop.f32.mrb[0].mxu0
        %v1244 = vpop.f32.mrb[0].mxu0
        %v1245 = vadd.f32 %v1084, %v1244
        %v1246 = vpop.f32.mrb[0].mxu0
        %1247 = vmatprep.mubr.bf16.mxu0 %v492
        %1248 = vmatmul.mubr.bf16.gmra.mrb[0].mxu0 %v491
        %v1249 = vpop.f32.mrb[0].mxu0
        %v1250 = vadd.f32 %v1089, %v1249
        %v1251 = vpop.f32.mrb[0].mxu0
        %v1252 = vpop.f32.mrb[0].mxu0
        %v1253 = vadd.f32 %v1092, %v1252
        %v1254 = vpop.f32.mrb[0].mxu0
        %1255 = vmatprep.mubr.bf16.mxu0 %v499
        %1256 = vmatmul.mubr.bf16.gmra.mrb[0].mxu0 %v498
        %v1257 = vpop.f32.mrb[0].mxu0
        %v1258 = vadd.f32 %v1097, %v1257
        %v1259 = vpop.f32.mrb[0].mxu0
        %v1260 = vpop.f32.mrb[0].mxu0
        %v1261 = vadd.f32 %v1100, %v1260
        %v1262 = vpop.f32.mrb[0].mxu0
        %1263 = vmatprep.mubr.bf16.mxu0 %v506
        %1264 = vmatmul.mubr.bf16.gmra.mrb[0].mxu0 %v505
        %v1265 = vpop.f32.mrb[0].mxu0
        %v1266 = vadd.f32 %v1105, %v1265
        %v1267 = vpop.f32.mrb[0].mxu0
        %v1268 = vpop.f32.mrb[0].mxu0
        %v1269 = vadd.f32 %v1108, %v1268
        %v1270 = vpop.f32.mrb[0].mxu0
        %1271 = vmatprep.mubr.bf16.mxu0 %v513
        %1272 = vmatmul.mubr.bf16.gmra.mrb[0].mxu0 %v512
        %v1273 = vpop.f32.mrb[0].mxu0
        %v1274 = vadd.f32 %v1113, %v1273
        %v1275 = vpop.f32.mrb[0].mxu0
        %v1276 = vpop.f32.mrb[0].mxu0
        %v1277 = vadd.f32 %v1116, %v1276
        %v1278 = vpop.f32.mrb[0].mxu0
        %1279 = vmatprep.mubr.bf16.mxu0 %v520
        %1280 = vmatmul.mubr.bf16.gmra.mrb[0].mxu0 %v519
        %v1281 = vpop.f32.mrb[0].mxu0
        %v1282 = vadd.f32 %v1121, %v1281
        %v1283 = vpop.f32.mrb[0].mxu0
        %v1284 = vpop.f32.mrb[0].mxu0
        %v1285 = vadd.f32 %v1124, %v1284
        %v1286 = vpop.f32.mrb[0].mxu0
        %1287 = vmatprep.mubr.bf16.mxu0 %v527
        %1288 = vmatmul.mubr.bf16.gmra.mrb[0].mxu0 %v526
        %v1289 = vpop.f32.mrb[0].mxu0
        %v1290 = vadd.f32 %v1129, %v1289
        %v1291 = vpop.f32.mrb[0].mxu0
        %v1292 = vpop.f32.mrb[0].mxu0
        %v1293 = vadd.f32 %v1132, %v1292
        %v1294 = vpop.f32.mrb[0].mxu0
        %1295 = vmatprep.mubr.bf16.mxu0 %v534
        %1296 = vmatmul.mubr.bf16.gmra.mrb[0].mxu0 %v533
        %v1297 = vpop.f32.mrb[0].mxu0
        %v1298 = vadd.f32 %v1137, %v1297
        %v1299 = vpop.f32.mrb[0].mxu0
        %v1300 = vpop.f32.mrb[0].mxu0
        %v1301 = vadd.f32 %v1140, %v1300
        %v1302 = vpop.f32.mrb[0].mxu0
        %1303 = vmatprep.mubr.bf16.mxu0 %v541
        %1304 = vmatmul.mubr.bf16.gmra.mrb[0].mxu0 %v540
        %v1305 = vpop.f32.mrb[0].mxu0
        %v1306 = vadd.f32 %v1145, %v1305
        %v1307 = vpop.f32.mrb[0].mxu0
        %v1308 = vpop.f32.mrb[0].mxu0
        %v1309 = vadd.f32 %v1148, %v1308
        %v1310 = vpop.f32.mrb[0].mxu0
        %1311 = vmatprep.mubr.bf16.mxu0 %v548
        %1312 = vmatmul.mubr.bf16.gmra.mrb[0].mxu0 %v547
        %v1313 = vpop.f32.mrb[0].mxu0
        %v1314 = vadd.f32 %v1153, %v1313
        %v1315 = vpop.f32.mrb[0].mxu0
        %v1316 = vpop.f32.mrb[0].mxu0
        %v1317 = vadd.f32 %v1156, %v1316
        %v1318 = vpop.f32.mrb[0].mxu0
        %1319 = vmatprep.mubr.bf16.mxu0 %v555
        %1320 = vmatmul.mubr.bf16.gmra.mrb[0].mxu0 %v554
        %v1321 = vpop.f32.mrb[0].mxu0
        %v1322 = vadd.f32 %v1161, %v1321
        %v1323 = vpop.f32.mrb[0].mxu0
        %v1324 = vpop.f32.mrb[0].mxu0
        %v1325 = vadd.f32 %v1164, %v1324
        %v1326 = vpop.f32.mrb[0].mxu0
        %1327 = vmatprep.mubr.bf16.mxu0 %v562
        %1328 = vmatmul.mubr.bf16.gmra.mrb[0].mxu0 %v561
        %v1329 = vpop.f32.mrb[0].mxu0
        %v1330 = vadd.f32 %v1169, %v1329
        %v1331 = vpop.f32.mrb[0].mxu0
        %v1332 = vpop.f32.mrb[0].mxu0
        %v1333 = vadd.f32 %v1172, %v1332
        %v1334 = vpop.f32.mrb[0].mxu0
        %1335 = vdwg.mxu0
        %1336 = vmatprep.subr.bf16.mxu0 0
        %1337 = vmatpush1.bf16.msra.mxu0 %v899
        %1338 = vmatprep.subr.bf16.mxu0 0
        %1339 = vmatpush1.bf16.msra.mxu0 %v900
        %1340 = vmatprep.subr.bf16.mxu0 0
        %1341 = vmatpush1.bf16.msra.mxu0 %v901
        %1342 = vmatprep.subr.bf16.mxu0 0
        %1343 = vmatpush1.bf16.msra.mxu0 %v902
        %1344 = vmatprep.subr.bf16.mxu0 0
        %1345 = vmatpush1.bf16.msra.mxu0 %v903
        %1346 = vmatprep.subr.bf16.mxu0 0
        %1347 = vmatpush1.bf16.msra.mxu0 %v904
        %1348 = vmatprep.subr.bf16.mxu0 0
        %1349 = vmatpush1.bf16.msra.mxu0 %v905
        %1350 = vmatprep.subr.bf16.mxu0 0
        %1351 = vmatpush1.bf16.msra.mxu0 %v906
        %1352 = vmatprep.subr.bf16.mxu0 0
        %1353 = vmatpush1.bf16.msra.mxu0 %v907
        %1354 = vmatprep.subr.bf16.mxu0 0
        %1355 = vmatpush1.bf16.msra.mxu0 %v908
        %1356 = vmatprep.subr.bf16.mxu0 0
        %1357 = vmatpush1.bf16.msra.mxu0 %v909
        %1358 = vmatprep.subr.bf16.mxu0 0
        %1359 = vmatpush1.bf16.msra.mxu0 %v910
        %1360 = vmatprep.subr.bf16.mxu0 0
        %1361 = vmatpush1.bf16.msra.mxu0 %v911
        %1362 = vmatprep.subr.bf16.mxu0 0
        %1363 = vmatpush1.bf16.msra.mxu0 %v912
        %1364 = vmatprep.subr.bf16.mxu0 0
        %1365 = vmatpush1.bf16.msra.mxu0 %v913
        %1366 = vmatprep.subr.bf16.mxu0 0
        %1367 = vmatpush1.bf16.msra.mxu0 %v914
        %1368 = vmatprep.mubr.bf16.mxu0 %v459
        %1369 = vmatmul.mubr.bf16.gmra.mrb[0].mxu0 %v458
        %v1370 = vpop.f32.mrb[0].mxu0
        %v1371 = vadd.f32 %v1210, %v1370
        %v1372 = vpop.f32.mrb[0].mxu0
        %v1373 = vpop.f32.mrb[0].mxu0
        %v1374 = vadd.f32 %v1213, %v1373
        %v1375 = vpop.f32.mrb[0].mxu0
        %1376 = vmatprep.mubr.bf16.mxu0 %v466
        %1377 = vmatmul.mubr.bf16.gmra.mrb[0].mxu0 %v465
        %v1378 = vpop.f32.mrb[0].mxu0
        %v1379 = vadd.f32 %v1218, %v1378
        %v1380 = vpop.f32.mrb[0].mxu0
        %v1381 = vpop.f32.mrb[0].mxu0
        %v1382 = vadd.f32 %v1221, %v1381
        %v1383 = vpop.f32.mrb[0].mxu0
        %1384 = vmatprep.mubr.bf16.mxu0 %v473
        %1385 = vmatmul.mubr.bf16.gmra.mrb[0].mxu0 %v472
        %v1386 = vpop.f32.mrb[0].mxu0
        %v1387 = vadd.f32 %v1226, %v1386
        %v1388 = vpop.f32.mrb[0].mxu0
        %v1389 = vpop.f32.mrb[0].mxu0
        %v1390 = vadd.f32 %v1229, %v1389
        %v1391 = vpop.f32.mrb[0].mxu0
        %1392 = vmatprep.mubr.bf16.mxu0 %v480
        %1393 = vmatmul.mubr.bf16.gmra.mrb[0].mxu0 %v479
        %v1394 = vpop.f32.mrb[0].mxu0
        %v1395 = vadd.f32 %v1234, %v1394
        %v1396 = vpop.f32.mrb[0].mxu0
        %v1397 = vpop.f32.mrb[0].mxu0
        %v1398 = vadd.f32 %v1237, %v1397
        %v1399 = vpop.f32.mrb[0].mxu0
        %1400 = vmatprep.mubr.bf16.mxu0 %v487
        %1401 = vmatmul.mubr.bf16.gmra.mrb[0].mxu0 %v486
        %v1402 = vpop.f32.mrb[0].mxu0
        %v1403 = vadd.f32 %v1242, %v1402
        %v1404 = vpop.f32.mrb[0].mxu0
        %v1405 = vpop.f32.mrb[0].mxu0
        %v1406 = vadd.f32 %v1245, %v1405
        %v1407 = vpop.f32.mrb[0].mxu0
        %1408 = vmatprep.mubr.bf16.mxu0 %v494
        %1409 = vmatmul.mubr.bf16.gmra.mrb[0].mxu0 %v493
        %v1410 = vpop.f32.mrb[0].mxu0
        %v1411 = vadd.f32 %v1250, %v1410
        %v1412 = vpop.f32.mrb[0].mxu0
        %v1413 = vpop.f32.mrb[0].mxu0
        %v1414 = vadd.f32 %v1253, %v1413
        %v1415 = vpop.f32.mrb[0].mxu0
        %1416 = vmatprep.mubr.bf16.mxu0 %v501
        %1417 = vmatmul.mubr.bf16.gmra.mrb[0].mxu0 %v500
        %v1418 = vpop.f32.mrb[0].mxu0
        %v1419 = vadd.f32 %v1258, %v1418
        %v1420 = vpop.f32.mrb[0].mxu0
        %v1421 = vpop.f32.mrb[0].mxu0
        %v1422 = vadd.f32 %v1261, %v1421
        %v1423 = vpop.f32.mrb[0].mxu0
        %1424 = vmatprep.mubr.bf16.mxu0 %v508
        %1425 = vmatmul.mubr.bf16.gmra.mrb[0].mxu0 %v507
        %v1426 = vpop.f32.mrb[0].mxu0
        %v1427 = vadd.f32 %v1266, %v1426
        %v1428 = vpop.f32.mrb[0].mxu0
        %v1429 = vpop.f32.mrb[0].mxu0
        %v1430 = vadd.f32 %v1269, %v1429
        %v1431 = vpop.f32.mrb[0].mxu0
        %1432 = vmatprep.mubr.bf16.mxu0 %v515
        %1433 = vmatmul.mubr.bf16.gmra.mrb[0].mxu0 %v514
        %v1434 = vpop.f32.mrb[0].mxu0
        %v1435 = vadd.f32 %v1274, %v1434
        %v1436 = vpop.f32.mrb[0].mxu0
        %v1437 = vpop.f32.mrb[0].mxu0
        %v1438 = vadd.f32 %v1277, %v1437
        %v1439 = vpop.f32.mrb[0].mxu0
        %1440 = vmatprep.mubr.bf16.mxu0 %v522
        %1441 = vmatmul.mubr.bf16.gmra.mrb[0].mxu0 %v521
        %v1442 = vpop.f32.mrb[0].mxu0
        %v1443 = vadd.f32 %v1282, %v1442
        %v1444 = vpop.f32.mrb[0].mxu0
        %v1445 = vpop.f32.mrb[0].mxu0
        %v1446 = vadd.f32 %v1285, %v1445
        %v1447 = vpop.f32.mrb[0].mxu0
        %1448 = vmatprep.mubr.bf16.mxu0 %v529
        %1449 = vmatmul.mubr.bf16.gmra.mrb[0].mxu0 %v528
        %v1450 = vpop.f32.mrb[0].mxu0
        %v1451 = vadd.f32 %v1290, %v1450
        %v1452 = vpop.f32.mrb[0].mxu0
        %v1453 = vpop.f32.mrb[0].mxu0
        %v1454 = vadd.f32 %v1293, %v1453
        %v1455 = vpop.f32.mrb[0].mxu0
        %1456 = vmatprep.mubr.bf16.mxu0 %v536
        %1457 = vmatmul.mubr.bf16.gmra.mrb[0].mxu0 %v535
        %v1458 = vpop.f32.mrb[0].mxu0
        %v1459 = vadd.f32 %v1298, %v1458
        %v1460 = vpop.f32.mrb[0].mxu0
        %v1461 = vpop.f32.mrb[0].mxu0
        %v1462 = vadd.f32 %v1301, %v1461
        %v1463 = vpop.f32.mrb[0].mxu0
        %1464 = vmatprep.mubr.bf16.mxu0 %v543
        %1465 = vmatmul.mubr.bf16.gmra.mrb[0].mxu0 %v542
        %v1466 = vpop.f32.mrb[0].mxu0
        %v1467 = vadd.f32 %v1306, %v1466
        %v1468 = vpop.f32.mrb[0].mxu0
        %v1469 = vpop.f32.mrb[0].mxu0
        %v1470 = vadd.f32 %v1309, %v1469
        %v1471 = vpop.f32.mrb[0].mxu0
        %1472 = vmatprep.mubr.bf16.mxu0 %v550
        %1473 = vmatmul.mubr.bf16.gmra.mrb[0].mxu0 %v549
        %v1474 = vpop.f32.mrb[0].mxu0
        %v1475 = vadd.f32 %v1314, %v1474
        %v1476 = vpop.f32.mrb[0].mxu0
        %v1477 = vpop.f32.mrb[0].mxu0
        %v1478 = vadd.f32 %v1317, %v1477
        %v1479 = vpop.f32.mrb[0].mxu0
        %1480 = vmatprep.mubr.bf16.mxu0 %v557
        %1481 = vmatmul.mubr.bf16.gmra.mrb[0].mxu0 %v556
        %v1482 = vpop.f32.mrb[0].mxu0
        %v1483 = vadd.f32 %v1322, %v1482
        %v1484 = vpop.f32.mrb[0].mxu0
        %v1485 = vpop.f32.mrb[0].mxu0
        %v1486 = vadd.f32 %v1325, %v1485
        %v1487 = vpop.f32.mrb[0].mxu0
        %1488 = vmatprep.mubr.bf16.mxu0 %v564
        %1489 = vmatmul.mubr.bf16.gmra.mrb[0].mxu0 %v563
        %v1490 = vpop.f32.mrb[0].mxu0
        %v1491 = vadd.f32 %v1330, %v1490
        %v1492 = vpop.f32.mrb[0].mxu0
        %v1493 = vpop.f32.mrb[0].mxu0
        %v1494 = vadd.f32 %v1333, %v1493
        %v1495 = vpop.f32.mrb[0].mxu0
        %1496 = vdwg.mxu0
        %1497 = vmatprep.subr.bf16.mxu0 0
        %1498 = vmatpush1.bf16.msra.mxu0 %v915
        %1499 = vmatprep.subr.bf16.mxu0 0
        %1500 = vmatpush1.bf16.msra.mxu0 0
        %1501 = vmatprep.subr.bf16.mxu0 0
        %1502 = vmatpush1.bf16.msra.mxu0 0
        %1503 = vmatprep.subr.bf16.mxu0 0
        %1504 = vmatpush1.bf16.msra.mxu0 0
        %1505 = vmatprep.subr.bf16.mxu0 0
        %1506 = vmatpush1.bf16.msra.mxu0 0
        %1507 = vmatprep.subr.bf16.mxu0 0
        %1508 = vmatpush1.bf16.msra.mxu0 0
        %1509 = vmatprep.subr.bf16.mxu0 0
        %1510 = vmatpush1.bf16.msra.mxu0 0
        %1511 = vmatprep.subr.bf16.mxu0 0
        %1512 = vmatpush1.bf16.msra.mxu0 0
        %1513 = vmatprep.subr.bf16.mxu0 0
        %1514 = vmatpush1.bf16.msra.mxu0 0
        %1515 = vmatprep.subr.bf16.mxu0 0
        %1516 = vmatpush1.bf16.msra.mxu0 0
        %1517 = vmatprep.subr.bf16.mxu0 0
        %1518 = vmatpush1.bf16.msra.mxu0 0
        %1519 = vmatprep.subr.bf16.mxu0 0
        %1520 = vmatpush1.bf16.msra.mxu0 0
        %1521 = vmatprep.subr.bf16.mxu0 0
        %1522 = vmatpush1.bf16.msra.mxu0 0
        %1523 = vmatprep.subr.bf16.mxu0 0
        %1524 = vmatpush1.bf16.msra.mxu0 0
        %1525 = vmatprep.subr.bf16.mxu0 0
        %1526 = vmatpush1.bf16.msra.mxu0 0
        %1527 = vmatprep.subr.bf16.mxu0 0
        %1528 = vmatpush1.bf16.msra.mxu0 0
        %1529 = vmatprep.mubr.bf16.mxu0 0
        %1530 = vmatmul.mubr.bf16.gmra.mrb[0].mxu0 %v967
        %v1531 = vpop.f32.mrb[0].mxu0
        %v1532 = vadd.f32 %v1371, %v1531
        %v1533 = vpop.f32.mrb[0].mxu0
        %v1534 = vpop.f32.mrb[0].mxu0
        %v1535 = vadd.f32 %v1374, %v1534
        %v1536 = vpop.f32.mrb[0].mxu0
        %1537 = vmatprep.mubr.bf16.mxu0 0
        %1538 = vmatmul.mubr.bf16.gmra.mrb[0].mxu0 %v970
        %v1539 = vpop.f32.mrb[0].mxu0
        %v1540 = vadd.f32 %v1379, %v1539
        %v1541 = vpop.f32.mrb[0].mxu0
        %v1542 = vpop.f32.mrb[0].mxu0
        %v1543 = vadd.f32 %v1382, %v1542
        %v1544 = vpop.f32.mrb[0].mxu0
        %1545 = vmatprep.mubr.bf16.mxu0 0
        %1546 = vmatmul.mubr.bf16.gmra.mrb[0].mxu0 %v973
        %v1547 = vpop.f32.mrb[0].mxu0
        %v1548 = vadd.f32 %v1387, %v1547
        %v1549 = vpop.f32.mrb[0].mxu0
        %v1550 = vpop.f32.mrb[0].mxu0
        %v1551 = vadd.f32 %v1390, %v1550
        %v1552 = vpop.f32.mrb[0].mxu0
        %1553 = vmatprep.mubr.bf16.mxu0 0
        %1554 = vmatmul.mubr.bf16.gmra.mrb[0].mxu0 %v976
        %v1555 = vpop.f32.mrb[0].mxu0
        %v1556 = vadd.f32 %v1395, %v1555
        %v1557 = vpop.f32.mrb[0].mxu0
        %v1558 = vpop.f32.mrb[0].mxu0
        %v1559 = vadd.f32 %v1398, %v1558
        %v1560 = vpop.f32.mrb[0].mxu0
        %1561 = vmatprep.mubr.bf16.mxu0 0
        %1562 = vmatmul.mubr.bf16.gmra.mrb[0].mxu0 %v979
        %v1563 = vpop.f32.mrb[0].mxu0
        %v1564 = vadd.f32 %v1403, %v1563
        %v1565 = vpop.f32.mrb[0].mxu0
        %v1566 = vpop.f32.mrb[0].mxu0
        %v1567 = vadd.f32 %v1406, %v1566
        %v1568 = vpop.f32.mrb[0].mxu0
        %1569 = vmatprep.mubr.bf16.mxu0 0
        %1570 = vmatmul.mubr.bf16.gmra.mrb[0].mxu0 %v982
        %v1571 = vpop.f32.mrb[0].mxu0
        %v1572 = vadd.f32 %v1411, %v1571
        %v1573 = vpop.f32.mrb[0].mxu0
        %v1574 = vpop.f32.mrb[0].mxu0
        %v1575 = vadd.f32 %v1414, %v1574
        %v1576 = vpop.f32.mrb[0].mxu0
        %1577 = vmatprep.mubr.bf16.mxu0 0
        %1578 = vmatmul.mubr.bf16.gmra.mrb[0].mxu0 %v985
        %v1579 = vpop.f32.mrb[0].mxu0
        %v1580 = vadd.f32 %v1419, %v1579
        %v1581 = vpop.f32.mrb[0].mxu0
        %v1582 = vpop.f32.mrb[0].mxu0
        %v1583 = vadd.f32 %v1422, %v1582
        %v1584 = vpop.f32.mrb[0].mxu0
        %1585 = vmatprep.mubr.bf16.mxu0 0
        %1586 = vmatmul.mubr.bf16.gmra.mrb[0].mxu0 %v988
        %v1587 = vpop.f32.mrb[0].mxu0
        %v1588 = vadd.f32 %v1427, %v1587
        %v1589 = vpop.f32.mrb[0].mxu0
        %v1590 = vpop.f32.mrb[0].mxu0
        %v1591 = vadd.f32 %v1430, %v1590
        %v1592 = vpop.f32.mrb[0].mxu0
        %1593 = vmatprep.mubr.bf16.mxu0 0
        %1594 = vmatmul.mubr.bf16.gmra.mrb[0].mxu0 %v991
        %v1595 = vpop.f32.mrb[0].mxu0
        %v1596 = vadd.f32 %v1435, %v1595
        %v1597 = vpop.f32.mrb[0].mxu0
        %v1598 = vpop.f32.mrb[0].mxu0
        %v1599 = vadd.f32 %v1438, %v1598
        %v1600 = vpop.f32.mrb[0].mxu0
        %1601 = vmatprep.mubr.bf16.mxu0 0
        %1602 = vmatmul.mubr.bf16.gmra.mrb[0].mxu0 %v994
        %v1603 = vpop.f32.mrb[0].mxu0
        %v1604 = vadd.f32 %v1443, %v1603
        %v1605 = vpop.f32.mrb[0].mxu0
        %v1606 = vpop.f32.mrb[0].mxu0
        %v1607 = vadd.f32 %v1446, %v1606
        %v1608 = vpop.f32.mrb[0].mxu0
        %1609 = vmatprep.mubr.bf16.mxu0 0
        %1610 = vmatmul.mubr.bf16.gmra.mrb[0].mxu0 %v997
        %v1611 = vpop.f32.mrb[0].mxu0
        %v1612 = vadd.f32 %v1451, %v1611
        %v1613 = vpop.f32.mrb[0].mxu0
        %v1614 = vpop.f32.mrb[0].mxu0
        %v1615 = vadd.f32 %v1454, %v1614
        %v1616 = vpop.f32.mrb[0].mxu0
        %1617 = vmatprep.mubr.bf16.mxu0 0
        %1618 = vmatmul.mubr.bf16.gmra.mrb[0].mxu0 %v1000
        %v1619 = vpop.f32.mrb[0].mxu0
        %v1620 = vadd.f32 %v1459, %v1619
        %v1621 = vpop.f32.mrb[0].mxu0
        %v1622 = vpop.f32.mrb[0].mxu0
        %v1623 = vadd.f32 %v1462, %v1622
        %v1624 = vpop.f32.mrb[0].mxu0
        %1625 = vmatprep.mubr.bf16.mxu0 0
        %1626 = vmatmul.mubr.bf16.gmra.mrb[0].mxu0 %v1003
        %v1627 = vpop.f32.mrb[0].mxu0
        %v1628 = vadd.f32 %v1467, %v1627
        %v1629 = vpop.f32.mrb[0].mxu0
        %v1630 = vpop.f32.mrb[0].mxu0
        %v1631 = vadd.f32 %v1470, %v1630
        %v1632 = vpop.f32.mrb[0].mxu0
        %1633 = vmatprep.mubr.bf16.mxu0 0
        %1634 = vmatmul.mubr.bf16.gmra.mrb[0].mxu0 %v1006
        %v1635 = vpop.f32.mrb[0].mxu0
        %v1636 = vadd.f32 %v1475, %v1635
        %v1637 = vpop.f32.mrb[0].mxu0
        %v1638 = vpop.f32.mrb[0].mxu0
        %v1639 = vadd.f32 %v1478, %v1638
        %v1640 = vpop.f32.mrb[0].mxu0
        %1641 = vmatprep.mubr.bf16.mxu0 0
        %1642 = vmatmul.mubr.bf16.gmra.mrb[0].mxu0 %v1009
        %v1643 = vpop.f32.mrb[0].mxu0
        %v1644 = vadd.f32 %v1483, %v1643
        %v1645 = vpop.f32.mrb[0].mxu0
        %v1646 = vpop.f32.mrb[0].mxu0
        %v1647 = vadd.f32 %v1486, %v1646
        %v1648 = vpop.f32.mrb[0].mxu0
        %1649 = vmatprep.mubr.bf16.mxu0 0
        %1650 = vmatmul.mubr.bf16.gmra.mrb[0].mxu0 %v1012
        %v1651 = vpop.f32.mrb[0].mxu0
        %v1652 = vadd.f32 %v1491, %v1651
        %v1653 = vpop.f32.mrb[0].mxu0
        %v1654 = vpop.f32.mrb[0].mxu0
        %v1655 = vadd.f32 %v1494, %v1654
        %v1656 = vpop.f32.mrb[0].mxu0
        %1657 = vdwg.mxu0
        %v1658 = vmax.f32 %v1532, 0.0
        %v1659 = vmax.f32 %v1535, 0.0
        %v1660 = vmax.f32 %v1540, 0.0
        %v1661 = vmax.f32 %v1543, 0.0
        %v1662 = vmax.f32 %v1548, 0.0
        %v1663 = vmax.f32 %v1551, 0.0
        %v1664 = vmax.f32 %v1556, 0.0
        %v1665 = vmax.f32 %v1559, 0.0
        %v1666 = vmax.f32 %v1564, 0.0
        %v1667 = vmax.f32 %v1567, 0.0
        %v1668 = vmax.f32 %v1572, 0.0
        %v1669 = vmax.f32 %v1575, 0.0
        %v1670 = vmax.f32 %v1580, 0.0
        %v1671 = vmax.f32 %v1583, 0.0
        %v1672 = vmax.f32 %v1588, 0.0
        %v1673 = vmax.f32 %v1591, 0.0
        %v1674 = vmax.f32 %v1596, 0.0
        %v1675 = vmax.f32 %v1599, 0.0
        %v1676 = vmax.f32 %v1604, 0.0
        %v1677 = vmax.f32 %v1607, 0.0
        %v1678 = vmax.f32 %v1612, 0.0
        %v1679 = vmax.f32 %v1615, 0.0
        %v1680 = vmax.f32 %v1620, 0.0
        %v1681 = vmax.f32 %v1623, 0.0
        %v1682 = vmax.f32 %v1628, 0.0
        %v1683 = vmax.f32 %v1631, 0.0
        %v1684 = vmax.f32 %v1636, 0.0
        %v1685 = vmax.f32 %v1639, 0.0
        %v1686 = vmax.f32 %v1644, 0.0
        %v1687 = vmax.f32 %v1647, 0.0
        %v1688 = vmax.f32 %v1652, 0.0
        %v1689 = vmax.f32 %v1655, 0.0
        %v1690 = vpack.c.bf16 %v1659, %v1658
        %v1691 = vpack.c.bf16 %v1661, %v1660
        %v1692 = vpack.c.bf16 %v1663, %v1662
        %v1693 = vpack.c.bf16 %v1665, %v1664
        %v1694 = vpack.c.bf16 %v1667, %v1666
        %v1695 = vpack.c.bf16 %v1669, %v1668
        %v1696 = vpack.c.bf16 %v1671, %v1670
        %v1697 = vpack.c.bf16 %v1673, %v1672
        %v1698 = vpack.c.bf16 %v1675, %v1674
        %v1699 = vpack.c.bf16 %v1677, %v1676
        %v1700 = vpack.c.bf16 %v1679, %v1678
        %v1701 = vpack.c.bf16 %v1681, %v1680
        %v1702 = vpack.c.bf16 %v1683, %v1682
        %v1703 = vpack.c.bf16 %v1685, %v1684
        %v1704 = vpack.c.bf16 %v1687, %v1686
        %v1705 = vpack.c.bf16 %v1689, %v1688
        %v1706 = vld [vmem:[%s3] sm:$0xf]
        %v1707 = vld [vmem:[%s3 + $0x4] sm:$0xf]
        %v1708 = vld [vmem:[%s3 + $0x8] sm:$0xf]
        %v1709 = vld [vmem:[%s3 + $0xc] sm:$0xf]
        %v1710 = vld [vmem:[%s3 + $0x10] sm:$0xf]
        %v1711 = vld [vmem:[%s3 + $0x14] sm:$0xf]
        %v1712 = vld [vmem:[%s3 + $0x18] sm:$0xf]
        %v1713 = vld [vmem:[%s3 + $0x1c] sm:$0xf]
        %v1714 = vld [vmem:[%s3 + $0x20] sm:$0xf]
        %v1715 = vld [vmem:[%s3 + $0x24] sm:$0xf]
        %v1716 = vld [vmem:[%s3 + $0x28] sm:$0xf]
        %v1717 = vld [vmem:[%s3 + $0x2c] sm:$0xf]
        %v1718 = vld [vmem:[%s3 + $0x30] sm:$0xf]
        %v1719 = vld [vmem:[%s3 + $0x34] sm:$0xf]
        %v1720 = vld [vmem:[%s3 + $0x38] sm:$0xf]
        %v1721 = vld [vmem:[%s3 + $0x3c] sm:$0xf]
        %v1722 = vld [vmem:[%s4] sm:$0x1]
        %v1724 = vlaneseq
        %v1725 = vshrl.u32 %v1724, 7
        %v1726 = vsub.s32 0, %v1725
        %v1727 = vrot.slane %v1722, %v1726
        %v1745 = vunpack.c.l.b16 %v1706
        %v1746 = vunpack.c.l.b16 %v1707
        %v1747 = vunpack.c.l.b16 %v1708
        %v1748 = vunpack.c.l.b16 %v1709
        %v1749 = vunpack.c.l.b16 %v1710
        %v1750 = vunpack.c.l.b16 %v1711
        %v1751 = vunpack.c.l.b16 %v1712
        %v1752 = vunpack.c.l.b16 %v1713
        %v1753 = vunpack.c.l.b16 %v1714
        %v1754 = vunpack.c.l.b16 %v1715
        %v1755 = vunpack.c.l.b16 %v1716
        %v1756 = vunpack.c.l.b16 %v1717
        %v1757 = vunpack.c.l.b16 %v1718
        %v1758 = vunpack.c.l.b16 %v1719
        %v1759 = vunpack.c.l.b16 %v1720
        %v1760 = vunpack.c.l.b16 %v1721
        %v1761 = vpack.c.b16 %v1746, %v1745
        %v1762 = vpack.c.b16 %v1748, %v1747
        %v1763 = vpack.c.b16 %v1750, %v1749
        %v1764 = vpack.c.b16 %v1752, %v1751
        %v1765 = vpack.c.b16 %v1754, %v1753
        %v1766 = vpack.c.b16 %v1756, %v1755
        %v1767 = vpack.c.b16 %v1758, %v1757
        %v1768 = vpack.c.b16 %v1760, %v1759
        %1777 = vmatprep.subr.bf16.mxu0 0
        %1778 = vmatpush1.bf16.msra.mxu0 %v1761
        %1779 = vmatprep.subr.bf16.mxu0 0
        %1780 = vmatpush1.bf16.msra.mxu0 %v1762
        %1781 = vmatprep.subr.bf16.mxu0 0
        %1782 = vmatpush1.bf16.msra.mxu0 %v1763
        %1783 = vmatprep.subr.bf16.mxu0 0
        %1784 = vmatpush1.bf16.msra.mxu0 %v1764
        %1785 = vmatprep.subr.bf16.mxu0 0
        %1786 = vmatpush1.bf16.msra.mxu0 %v1765
        %1787 = vmatprep.subr.bf16.mxu0 0
        %1788 = vmatpush1.bf16.msra.mxu0 %v1766
        %1789 = vmatprep.subr.bf16.mxu0 0
        %1790 = vmatpush1.bf16.msra.mxu0 %v1767
        %1791 = vmatprep.subr.bf16.mxu0 0
        %1792 = vmatpush1.bf16.msra.mxu0 %v1768
        %1793 = vmatprep.subr.bf16.mxu0 0
        %1794 = vmatpush1.bf16.msra.mxu0 0
        %1795 = vmatprep.subr.bf16.mxu0 0
        %1796 = vmatpush1.bf16.msra.mxu0 0
        %1797 = vmatprep.subr.bf16.mxu0 0
        %1798 = vmatpush1.bf16.msra.mxu0 0
        %1799 = vmatprep.subr.bf16.mxu0 0
        %1800 = vmatpush1.bf16.msra.mxu0 0
        %1801 = vmatprep.subr.bf16.mxu0 0
        %1802 = vmatpush1.bf16.msra.mxu0 0
        %1803 = vmatprep.subr.bf16.mxu0 0
        %1804 = vmatpush1.bf16.msra.mxu0 0
        %1805 = vmatprep.subr.bf16.mxu0 0
        %1806 = vmatpush1.bf16.msra.mxu0 0
        %1807 = vmatprep.subr.bf16.mxu0 0
        %1808 = vmatpush1.bf16.msra.mxu0 0
        %1809 = vmatprep.mubr.bf16.mxu0 0
        %1810 = vmatmul.mubr.bf16.gmra.mrb[0].mxu0 %v1690
        %v1811 = vpop.f32.mrb[0].mxu0
        %v1812 = vadd.f32 %v1727, %v1811
        %v1813 = vpop.f32.mrb[0].mxu0
        %v1814 = vpop.f32.mrb[0].mxu0
        %v1815 = vadd.f32 %v1727, %v1814
        %v1816 = vpop.f32.mrb[0].mxu0
        %1817 = vmatprep.mubr.bf16.mxu0 0
        %1818 = vmatmul.mubr.bf16.gmra.mrb[0].mxu0 %v1691
        %v1819 = vpop.f32.mrb[0].mxu0
        %v1820 = vadd.f32 %v1727, %v1819
        %v1821 = vpop.f32.mrb[0].mxu0
        %v1822 = vpop.f32.mrb[0].mxu0
        %v1823 = vadd.f32 %v1727, %v1822
        %v1824 = vpop.f32.mrb[0].mxu0
        %1825 = vmatprep.mubr.bf16.mxu0 0
        %1826 = vmatmul.mubr.bf16.gmra.mrb[0].mxu0 %v1692
        %v1827 = vpop.f32.mrb[0].mxu0
        %v1828 = vadd.f32 %v1727, %v1827
        %v1829 = vpop.f32.mrb[0].mxu0
        %v1830 = vpop.f32.mrb[0].mxu0
        %v1831 = vadd.f32 %v1727, %v1830
        %v1832 = vpop.f32.mrb[0].mxu0
        %1833 = vmatprep.mubr.bf16.mxu0 0
        %1834 = vmatmul.mubr.bf16.gmra.mrb[0].mxu0 %v1693
        %v1835 = vpop.f32.mrb[0].mxu0
        %v1836 = vadd.f32 %v1727, %v1835
        %v1837 = vpop.f32.mrb[0].mxu0
        %v1838 = vpop.f32.mrb[0].mxu0
        %v1839 = vadd.f32 %v1727, %v1838
        %v1840 = vpop.f32.mrb[0].mxu0
        %1841 = vmatprep.mubr.bf16.mxu0 0
        %1842 = vmatmul.mubr.bf16.gmra.mrb[0].mxu0 %v1694
        %v1843 = vpop.f32.mrb[0].mxu0
        %v1844 = vadd.f32 %v1727, %v1843
        %v1845 = vpop.f32.mrb[0].mxu0
        %v1846 = vpop.f32.mrb[0].mxu0
        %v1847 = vadd.f32 %v1727, %v1846
        %v1848 = vpop.f32.mrb[0].mxu0
        %1849 = vmatprep.mubr.bf16.mxu0 0
        %1850 = vmatmul.mubr.bf16.gmra.mrb[0].mxu0 %v1695
        %v1851 = vpop.f32.mrb[0].mxu0
        %v1852 = vadd.f32 %v1727, %v1851
        %v1853 = vpop.f32.mrb[0].mxu0
        %v1854 = vpop.f32.mrb[0].mxu0
        %v1855 = vadd.f32 %v1727, %v1854
        %v1856 = vpop.f32.mrb[0].mxu0
        %1857 = vmatprep.mubr.bf16.mxu0 0
        %1858 = vmatmul.mubr.bf16.gmra.mrb[0].mxu0 %v1696
        %v1859 = vpop.f32.mrb[0].mxu0
        %v1860 = vadd.f32 %v1727, %v1859
        %v1861 = vpop.f32.mrb[0].mxu0
        %v1862 = vpop.f32.mrb[0].mxu0
        %v1863 = vadd.f32 %v1727, %v1862
        %v1864 = vpop.f32.mrb[0].mxu0
        %1865 = vmatprep.mubr.bf16.mxu0 0
        %1866 = vmatmul.mubr.bf16.gmra.mrb[0].mxu0 %v1697
        %v1867 = vpop.f32.mrb[0].mxu0
        %v1868 = vadd.f32 %v1727, %v1867
        %v1869 = vpop.f32.mrb[0].mxu0
        %v1870 = vpop.f32.mrb[0].mxu0
        %v1871 = vadd.f32 %v1727, %v1870
        %v1872 = vpop.f32.mrb[0].mxu0
        %1873 = vmatprep.mubr.bf16.mxu0 0
        %1874 = vmatmul.mubr.bf16.gmra.mrb[0].mxu0 %v1698
        %v1875 = vpop.f32.mrb[0].mxu0
        %v1876 = vadd.f32 %v1727, %v1875
        %v1877 = vpop.f32.mrb[0].mxu0
        %v1878 = vpop.f32.mrb[0].mxu0
        %v1879 = vadd.f32 %v1727, %v1878
        %v1880 = vpop.f32.mrb[0].mxu0
        %1881 = vmatprep.mubr.bf16.mxu0 0
        %1882 = vmatmul.mubr.bf16.gmra.mrb[0].mxu0 %v1699
        %v1883 = vpop.f32.mrb[0].mxu0
        %v1884 = vadd.f32 %v1727, %v1883
        %v1885 = vpop.f32.mrb[0].mxu0
        %v1886 = vpop.f32.mrb[0].mxu0
        %v1887 = vadd.f32 %v1727, %v1886
        %v1888 = vpop.f32.mrb[0].mxu0
        %1889 = vmatprep.mubr.bf16.mxu0 0
        %1890 = vmatmul.mubr.bf16.gmra.mrb[0].mxu0 %v1700
        %v1891 = vpop.f32.mrb[0].mxu0
        %v1892 = vadd.f32 %v1727, %v1891
        %v1893 = vpop.f32.mrb[0].mxu0
        %v1894 = vpop.f32.mrb[0].mxu0
        %v1895 = vadd.f32 %v1727, %v1894
        %v1896 = vpop.f32.mrb[0].mxu0
        %1897 = vmatprep.mubr.bf16.mxu0 0
        %1898 = vmatmul.mubr.bf16.gmra.mrb[0].mxu0 %v1701
        %v1899 = vpop.f32.mrb[0].mxu0
        %v1900 = vadd.f32 %v1727, %v1899
        %v1901 = vpop.f32.mrb[0].mxu0
        %v1902 = vpop.f32.mrb[0].mxu0
        %v1903 = vadd.f32 %v1727, %v1902
        %v1904 = vpop.f32.mrb[0].mxu0
        %1905 = vmatprep.mubr.bf16.mxu0 0
        %1906 = vmatmul.mubr.bf16.gmra.mrb[0].mxu0 %v1702
        %v1907 = vpop.f32.mrb[0].mxu0
        %v1908 = vadd.f32 %v1727, %v1907
        %v1909 = vpop.f32.mrb[0].mxu0
        %v1910 = vpop.f32.mrb[0].mxu0
        %v1911 = vadd.f32 %v1727, %v1910
        %v1912 = vpop.f32.mrb[0].mxu0
        %1913 = vmatprep.mubr.bf16.mxu0 0
        %1914 = vmatmul.mubr.bf16.gmra.mrb[0].mxu0 %v1703
        %v1915 = vpop.f32.mrb[0].mxu0
        %v1916 = vadd.f32 %v1727, %v1915
        %v1917 = vpop.f32.mrb[0].mxu0
        %v1918 = vpop.f32.mrb[0].mxu0
        %v1919 = vadd.f32 %v1727, %v1918
        %v1920 = vpop.f32.mrb[0].mxu0
        %1921 = vmatprep.mubr.bf16.mxu0 0
        %1922 = vmatmul.mubr.bf16.gmra.mrb[0].mxu0 %v1704
        %v1923 = vpop.f32.mrb[0].mxu0
        %v1924 = vadd.f32 %v1727, %v1923
        %v1925 = vpop.f32.mrb[0].mxu0
        %v1926 = vpop.f32.mrb[0].mxu0
        %v1927 = vadd.f32 %v1727, %v1926
        %v1928 = vpop.f32.mrb[0].mxu0
        %1929 = vmatprep.mubr.bf16.mxu0 0
        %1930 = vmatmul.mubr.bf16.gmra.mrb[0].mxu0 %v1705
        %v1931 = vpop.f32.mrb[0].mxu0
        %v1932 = vadd.f32 %v1727, %v1931
        %v1933 = vpop.f32.mrb[0].mxu0
        %v1934 = vpop.f32.mrb[0].mxu0
        %v1935 = vadd.f32 %v1727, %v1934
        %v1936 = vpop.f32.mrb[0].mxu0
        %1937 = vdwg.mxu0
        %1938 = vst [vmem:[%s220] sm:$0xff] %v1812
        %1939 = vst [vmem:[%s220 + $0x8] sm:$0xff] %v1815
        %1940 = vst [vmem:[%s220 + $0x10] sm:$0xff] %v1820
        %1941 = vst [vmem:[%s220 + $0x18] sm:$0xff] %v1823
        %1942 = vst [vmem:[%s220 + $0x20] sm:$0xff] %v1828
        %1943 = vst [vmem:[%s220 + $0x28] sm:$0xff] %v1831
        %1944 = vst [vmem:[%s220 + $0x30] sm:$0xff] %v1836
        %1945 = vst [vmem:[%s220 + $0x38] sm:$0xff] %v1839
        %1946 = vst [vmem:[%s220 + $0x40] sm:$0xff] %v1844
        %1947 = vst [vmem:[%s220 + $0x48] sm:$0xff] %v1847
        %1948 = vst [vmem:[%s220 + $0x50] sm:$0xff] %v1852
        %1949 = vst [vmem:[%s220 + $0x58] sm:$0xff] %v1855
        %1950 = vst [vmem:[%s220 + $0x60] sm:$0xff] %v1860
        %1951 = vst [vmem:[%s220 + $0x68] sm:$0xff] %v1863
        %1952 = vst [vmem:[%s220 + $0x70] sm:$0xff] %v1868
        %1953 = vst [vmem:[%s220 + $0x78] sm:$0xff] %v1871
        %1954 = vst [vmem:[%s220 + $0x80] sm:$0xff] %v1876
        %1955 = vst [vmem:[%s220 + $0x88] sm:$0xff] %v1879
        %1956 = vst [vmem:[%s220 + $0x90] sm:$0xff] %v1884
        %1957 = vst [vmem:[%s220 + $0x98] sm:$0xff] %v1887
        %1958 = vst [vmem:[%s220 + $0xa0] sm:$0xff] %v1892
        %1959 = vst [vmem:[%s220 + $0xa8] sm:$0xff] %v1895
        %1960 = vst [vmem:[%s220 + $0xb0] sm:$0xff] %v1900
        %1961 = vst [vmem:[%s220 + $0xb8] sm:$0xff] %v1903
        %1962 = vst [vmem:[%s220 + $0xc0] sm:$0xff] %v1908
        %1963 = vst [vmem:[%s220 + $0xc8] sm:$0xff] %v1911
        %1964 = vst [vmem:[%s220 + $0xd0] sm:$0xff] %v1916
        %1965 = vst [vmem:[%s220 + $0xd8] sm:$0xff] %v1919
        %1966 = vst [vmem:[%s220 + $0xe0] sm:$0xff] %v1924
        %1967 = vst [vmem:[%s220 + $0xe8] sm:$0xff] %v1927
        %1968 = vst [vmem:[%s220 + $0xf0] sm:$0xff] %v1932
        %1969 = vst [vmem:[%s220 + $0xf8] sm:$0xff] %v1935
        %s1970 = sand.u32 %s137, 1
        %s1971 = scalar_lea.sflag [#allocation3], %s1970
        %s1972 = sand.u32 %s137, 1
        %s1973 = smul.addr %s1972, 256
        %s1974 = scalar_lea.vmem [#allocation2], %s1973
        // Predicated region
        $region41: #{tpu_custom_call.1} parent=39 // pred_check
          %p1975 = pneg %p147
        $region42: #{tpu_custom_call.1} parent=39 // pred_check_branch
          %1977 = sbr.rel (%p1975) target = $region44
        $region43: #{tpu_custom_call.1} parent=39 // pred_region
          %s1978 = smul.u32 32, %s19
          %s1980 = ssub.s32 4096, 4096
          %1981 = vsyncadd %s1971, %s1980
          %s1982 = smul.addr %s1978, 128
          %s1983 = scalar_lea.hbm %s5, %s1982
          %s1984 = sshll.u32 %s1974, 4
          %s1985 = int_to_ptr.vmem [resolvable:$true] %s1984
          %1990 = dma.vmem_to_hbm [thread:$0]  %s1985, 4096, %s1983, %s1971, 128, 128, 8
        $region44: #{tpu_custom_call.1} parent=39 // pred_fallthru
          _
      $region40: #{tpu_custom_call.1} parent=5 // pred_fallthru
        _
      %p1991 = scmp.le.s32.totalorder 2, %s14
      // Predicated region
      $region45: #{tpu_custom_call.1} parent=5 // pred_check
        %p1992 = pneg %p1991
      $region46: #{tpu_custom_call.1} parent=5 // pred_check_branch
        %1994 = sbr.rel (%p1992) target = $region48
      $region47: #{tpu_custom_call.1} parent=5 // pred_region
        %s1995 = ssub.s32 %s14, 2
        // Predicated region
        $region49: #{tpu_custom_call.1} parent=47 // pred_check
          %p1996 = pneg %p153
        $region50: #{tpu_custom_call.1} parent=47 // pred_check_branch
          %1998 = sbr.rel (%p1996) target = $region52
        $region51: #{tpu_custom_call.1} parent=47 // pred_region
          %s1999 = sand.u32 %s138, 1
          %s2000 = scalar_lea.sflag [#allocation3], %s1999
          %s2001 = sand.u32 %s138, 1
          %s2002 = smul.addr %s2001, 256
          %s2003 = scalar_lea.vmem [#allocation2], %s2002
          %2004 = dma.done %s2000, 4096
        $region52: #{tpu_custom_call.1} parent=47 // pred_fallthru
          _
      $region48: #{tpu_custom_call.1} parent=5 // pred_fallthru
        _
    $region6: #{tpu_custom_call.1} parent=1 // loop_footer
      %s18 = sadd.s32 1, %s14
    $region7: #{tpu_custom_call.1} parent=1 // loop_footer_branch
      %13 = sbr.rel target = $region3
    $region8: #{tpu_custom_call.1} parent=1 // loop_exit
      _
    %2005 = vsyncpa [#allocation3], 1
    %s2006 = scalar_lea.sflag [#allocation3], 1
    %2007 = vsyncpa %s2006, 1

</llo_original>
